<compile_context>
chip_gen: v7x
topology: tpu7x:2x2x1
jax: 0.10.0
libtpu: 0.0.40
codegen_flags: <defaults>
</compile_context>

<pallas_src>
import jax
import jax.numpy as jnp
from jax.experimental import pallas as pl
from jax.experimental.pallas import tpu as pltpu

BN_EPS = 1e-5

# ----- hyperparameters (small, consistent with the module) -----
BATCH = 2
IN_CHANNELS = 4          # args.input_channels
BLOCK_CHANNELS = 8       # args.block_channels
CONV_K, CONV_PAD = 3, 1  # conv_block_kernel_size / padding
RES_K, RES_PAD = 3, 1    # res_block_kernel_size / padding
NUM_RES_BLOCKS = 2
BOARD_H, BOARD_W = 8, 8  # game.board_shape()
OUT_SIZE = 16            # len(action_space)
POLICY_CHANNELS = 2      # fixed by PolicyHead
VALUE_HIDDEN = 32        # fixed by ValueHead


def _round8(r):
    return -(-r // 8) * 8


def _tap_offsets():
    # Union of (dh, dw) taps used by the conv block and the res blocks,
    # excluding the center tap (which needs no roll and no mask).
    r = max(CONV_K, RES_K) // 2
    return [(dh, dw) for dh in range(-r, r + 1) for dw in range(-r, r + 1)
            if not (dh == 0 and dw == 0)]


def _slab_layout():
    """Row layout of the single packed parameter slab (all blocks 8-row aligned)."""
    ci_pad = _round8(IN_CHANNELS)
    cb = BLOCK_CHANNELS
    hw = BOARD_H * BOARD_W
    n = BATCH * hw
    offsets = _tap_offsets()
    slab_cols = max(n, CONV_K * CONV_K * ci_pad + 1, RES_K * RES_K * cb + 1, 128)

    layout = {}
    row = 0

    def add(name, rows, cols):
        nonlocal row
        layout[name] = (row, rows, cols)
        row += _round8(rows)

    add("cb", cb, CONV_K * CONV_K * ci_pad + 1)          # conv block  w|b
    for i in range(NUM_RES_BLOCKS):
        add(f"r{i}a", cb, RES_K * RES_K * cb + 1)        # res conv 1  w|b
        add(f"r{i}b", cb, RES_K * RES_K * cb + 1)        # res conv 2  w|b
    add("masks", len(offsets), n)                        # per-tap on-board masks
    add("pd_w", POLICY_CHANNELS * OUT_SIZE, n)           # policy dense, batch-tiled
    add("v1_w", VALUE_HIDDEN, n)                         # value dense1, batch-tiled
    add("segT", n, n)                                    # batch-segment selector (N, N)
    add("pc", POLICY_CHANNELS, cb + 1)                   # policy 1x1 conv w|b
    add("vc", 1, cb + 1)                                 # value 1x1 conv  w|b
    add("pd_b", OUT_SIZE, 1)
    add("v1_b", VALUE_HIDDEN, 1)
    add("v2_w", 1, VALUE_HIDDEN)
    add("v2_b", 1, 1)
    return layout, row, slab_cols, offsets, ci_pad


# ---------------------------------------------------------------------------
# Fused forward kernel
# ---------------------------------------------------------------------------
def _make_fused_kernel(layout, offsets, B, H, W, ci_pad):
    N = B * H * W          # spatial*batch axis on lanes (=128 here)
    cb = BLOCK_CHANNELS
    out = OUT_SIZE
    f32 = jnp.float32
    moff = {o: i for i, o in enumerate(offsets)}

    # The roll+mask im2col is only valid for "same" convs whose taps never
    # shift by more than one board row/column (correctness concern from review).
    assert CONV_PAD == CONV_K // 2 and RES_PAD == RES_K // 2
    assert max(CONV_K, RES_K) // 2 < min(H, W)

    def kernel(x_ref, p_ref, o_ref):
        def load(name):
            r0, rows, cols = layout[name]
            return p_ref[r0:r0 + rows, 0:cols]

        def conv_params(name, kk, cin):
            r0, rows, _ = layout[name]
            c = kk * kk * cin
            return p_ref[r0:r0 + rows, 0:c], p_ref[r0:r0 + rows, c:c + 1]

        masks = load("masks")        # (n_taps, N) shared by all convs
        segT = load("segT")          # (N, N) batch-segment selector (cols >= B are 0)

        def conv_same(x, w, b, K):
            # "same" KxK conv (+ folded BN) as ONE im2col matmul.  Lane shifts
            # are circular pltpu.roll's (XLU slot); off-board / wrapped lanes
            # are zeroed by the precomputed masks.  Center tap: no roll, no mask.
            r = K // 2
            taps = []
            for dh in range(-r, r + 1):
                for dw in range(-r, r + 1):
                    if dh == 0 and dw == 0:
                        taps.append(x)
                        continue
                    off = dh * W + dw
                    shifted = pltpu.roll(x, (-off) % N, axis=1)
                    j = moff[(dh, dw)]
                    taps.append(shifted * masks[j:j + 1, :])
            patches = jnp.concatenate(taps, axis=0) if len(taps) > 1 else taps[0]
            return jnp.dot(w, patches, preferred_element_type=f32) + b

        # ---- trunk: ConvBlock + ResBlocks (activations stay (C, N) lane-dense) ----
        w0, b0 = conv_params("cb", CONV_K, ci_pad)
        x = jnp.maximum(conv_same(x_ref[...], w0, b0, CONV_K), 0.0)
        for i in range(NUM_RES_BLOCKS):
            w1, b1 = conv_params(f"r{i}a", RES_K, cb)
            w2, b2 = conv_params(f"r{i}b", RES_K, cb)
            h = jnp.maximum(conv_same(x, w1, b1, RES_K), 0.0)
            x = jnp.maximum(conv_same(h, w2, b2, RES_K) + x, 0.0)

        # ---- policy head: 1x1 conv(+BN)+ReLU, flatten folded into pd_w,
        #      dense via segT (standard MXU orientation), softmax over actions ----
        pc_w, pc_b = conv_params("pc", 1, cb)
        ph = jnp.maximum(jnp.dot(pc_w, x, preferred_element_type=f32) + pc_b, 0.0)   # (2, N)
        r0, _, _ = layout["pd_w"]
        pd0 = p_ref[r0:r0 + out, 0:N]                 # channel-0 weight slab (out, N)
        pd1 = p_ref[r0 + out:r0 + 2 * out, 0:N]       # channel-1 weight slab (out, N)
        t = pd0 * ph[0:1, :] + pd1 * ph[1:2, :]                                        # (out, N)
        logits = jnp.dot(t, segT, preferred_element_type=f32) + load("pd_b")           # (out, N)
        m = jnp.max(logits, axis=0, keepdims=True)
        e = jnp.exp(logits - m)
        probs = e / jnp.sum(e, axis=0, keepdims=True)                                  # (out, N)

        # ---- value head: 1x1 conv(+BN)+ReLU, dense(HW->32)+ReLU, dense(32->1), tanh ----
        vc_w, vc_b = conv_params("vc", 1, cb)
        vh = jnp.maximum(jnp.dot(vc_w, x, preferred_element_type=f32) + vc_b, 0.0)     # (1, N)
        u = load("v1_w") * vh                                                          # (32, N)
        hid = jnp.maximum(jnp.dot(u, segT, preferred_element_type=f32)
                          + load("v1_b"), 0.0)                                         # (32, N)
        val = jnp.tanh(jnp.dot(load("v2_w"), hid, preferred_element_type=f32)
                       + load("v2_b"))                                                 # (1, N)

        # ---- single lane-dense output slab: rows 0..out-1 = policy^T, row out = value^T
        #      (only columns 0..B-1 are meaningful; the rest is harmless filler) ----
        o_ref[0:out, :] = probs
        o_ref[out:out + 1, :] = val

    return kernel


# ---------------------------------------------------------------------------
# Wrapper: single pallas_call, 2 inputs (x + packed slab), 1 output slab
# ---------------------------------------------------------------------------
def residual_network_forward(x_nchw, slab):
    B, Ci, H, W = x_nchw.shape
    assert (B, Ci, H, W) == (BATCH, IN_CHANNELS, BOARD_H, BOARD_W)
    N = B * H * W
    layout, _, _, offsets, ci_pad = _slab_layout()

    # NCHW -> (C, B*H*W): channels on sublanes, spatial*batch on lanes.
    # Zero-pad channels to a full (8, 128) tile so every im2col tap is tile-aligned.
    x2d = jnp.transpose(x_nchw.astype(jnp.float32), (1, 0, 2, 3)).reshape(Ci, N)
    x2d = jnp.pad(x2d, ((0, ci_pad - Ci), (0, 0)))

    kernel = _make_fused_kernel(layout, offsets, B, H, W, ci_pad)
    out = pl.pallas_call(
        kernel,
        out_shape=jax.ShapeDtypeStruct((OUT_SIZE + 1, N), jnp.float32),
    )(x2d, slab)

    policy = out[:OUT_SIZE, :B].T                # (B, out)
    value = out[OUT_SIZE:OUT_SIZE + 1, :B].T     # (B, 1)
    return policy, value


# ---------------------------------------------------------------------------
# Parameter preparation: fold BatchNorm(eval), pack everything into ONE slab
# ---------------------------------------------------------------------------
def prepare_kernel_params(raw):
    H, W = BOARD_H, BOARD_W
    HW = H * W
    B = BATCH
    N = B * HW
    layout, total_rows, slab_cols, offsets, ci_pad = _slab_layout()
    f32 = jnp.float32

    def fold(p, cin_pad=None):
        # Fold eval-mode BN into the conv:  w' = w*gamma*rsqrt(var+eps),
        # b' = (b-mean)*scale + beta.  Returns an (co, K*K*Ci[+pad] + 1) block
        # with the bias in the last column; weight column order = (kh, kw, ci).
        scale = p["gamma"] * jax.lax.rsqrt(p["var"] + BN_EPS)
        w = p["w"] * scale[:, None, None, None]
        b = (p["b"] - p["mean"]) * scale + p["beta"]
        co, ci, kh, kw = p["w"].shape
        if cin_pad is not None and cin_pad > ci:
            w = jnp.pad(w, ((0, 0), (0, cin_pad - ci), (0, 0), (0, 0)))
            ci = cin_pad
        w_mat = jnp.transpose(w, (0, 2, 3, 1)).reshape(co, kh * kw * ci)
        return jnp.concatenate([w_mat, b.reshape(co, 1)], axis=1).astype(f32)

    def place(slab, name, val):
        r0, rows, cols = layout[name]
        val = jnp.asarray(val, f32)
        assert val.shape == (rows, cols), (name, val.shape, (rows, cols))
        return slab.at[r0:r0 + rows, 0:cols].set(val)

    slab = jnp.zeros((total_rows, slab_cols), f32)

    slab = place(slab, "cb", fold(raw["conv_block"], cin_pad=ci_pad))
    for i, rb in enumerate(raw["res_blocks"]):
        slab = place(slab, f"r{i}a", fold(rb["c1"]))
        slab = place(slab, f"r{i}b", fold(rb["c2"]))

    # Precomputed per-tap on-board masks (shared by every conv).
    n_idx = jnp.arange(N)
    h_idx = (n_idx // W) % H
    w_idx = n_idx % W
    mrows = []
    for (dh, dw) in offsets:
        ok = ((h_idx + dh >= 0) & (h_idx + dh < H) &
              (w_idx + dw >= 0) & (w_idx + dw < W))
        mrows.append(ok.astype(f32))
    slab = place(slab, "masks", jnp.stack(mrows, axis=0))

    # Batch-segment selector, pre-oriented (N, N): segT[n, b] = 1 iff lane n is
    # in batch b (columns >= BATCH are all-zero filler).
    b_of_n = n_idx // HW
    segT = (b_of_n[:, None] == jnp.arange(N)[None, :]).astype(f32)
    slab = place(slab, "segT", segT)

    # Policy head: the torch NCHW .view flatten (channel-major, then h, w) is
    # folded into per-channel weight slabs tiled over the batch segments.
    slab = place(slab, "pc", fold(raw["p_head"]["conv"]))
    wd = raw["p_head"]["w"]                       # (out, 2*HW)
    pd_w = jnp.concatenate(
        [jnp.tile(wd[:, c * HW:(c + 1) * HW], (1, B)) for c in range(POLICY_CHANNELS)],
        axis=0)                                   # (2*out, N)
    slab = place(slab, "pd_w", pd_w)
    slab = place(slab, "pd_b", raw["p_head"]["bias"].reshape(OUT_SIZE, 1))

    # Value head.
    slab = place(slab, "vc", fold(raw["v_head"]["conv"]))
    slab = place(slab, "v1_w", jnp.tile(raw["v_head"]["w1"], (1, B)))     # (32, N)
    slab = place(slab, "v1_b", raw["v_head"]["b1"].reshape(VALUE_HIDDEN, 1))
    slab = place(slab, "v2_w", raw["v_head"]["w2"].reshape(1, VALUE_HIDDEN))
    slab = place(slab, "v2_b", raw["v_head"]["b2"].reshape(1, 1))
    return slab


# ---------------------------------------------------------------------------
# Deterministic raw (torch-layout) parameters
# ---------------------------------------------------------------------------
def _conv_bn_raw(key, ci, co, k):
    k1, k2, k3, k4, k5, k6 = jax.random.split(key, 6)
    return {
        "w": jax.random.normal(k1, (co, ci, k, k), jnp.float32) / ((ci * k * k) ** 0.5),
        "b": 0.1 * jax.random.normal(k2, (co,), jnp.float32),
        "gamma": 1.0 + 0.1 * jax.random.normal(k3, (co,), jnp.float32),
        "beta": 0.1 * jax.random.normal(k4, (co,), jnp.float32),
        "mean": 0.05 * jax.random.normal(k5, (co,), jnp.float32),
        "var": 1.0 + 0.1 * jax.random.uniform(k6, (co,), jnp.float32),
    }


def init_raw_params(key):
    keys = jax.random.split(key, 4 + 2 * NUM_RES_BLOCKS + 8)
    it = iter(keys)
    raw = {"conv_block": _conv_bn_raw(next(it), IN_CHANNELS, BLOCK_CHANNELS, CONV_K)}
    raw["res_blocks"] = [
        {"c1": _conv_bn_raw(next(it), BLOCK_CHANNELS, BLOCK_CHANNELS, RES_K),
         "c2": _conv_bn_raw(next(it), BLOCK_CHANNELS, BLOCK_CHANNELS, RES_K)}
        for _ in range(NUM_RES_BLOCKS)]

    HW = BOARD_H * BOARD_W
    p_in = POLICY_CHANNELS * HW
    raw["p_head"] = {
        "conv": _conv_bn_raw(next(it), BLOCK_CHANNELS, POLICY_CHANNELS, 1),
        "w": jax.random.normal(next(it), (OUT_SIZE, p_in), jnp.float32) / (p_in ** 0.5),
        "bias": 0.1 * jax.random.normal(next(it), (OUT_SIZE,), jnp.float32),
    }
    raw["v_head"] = {
        "conv": _conv_bn_raw(next(it), BLOCK_CHANNELS, 1, 1),
        "w1": jax.random.normal(next(it), (VALUE_HIDDEN, HW), jnp.float32) / (HW ** 0.5),
        "b1": 0.1 * jax.random.normal(next(it), (VALUE_HIDDEN,), jnp.float32),
        "w2": jax.random.normal(next(it), (1, VALUE_HIDDEN), jnp.float32) / (VALUE_HIDDEN ** 0.5),
        "b2": 0.1 * jax.random.normal(next(it), (1,), jnp.float32),
    }
    return raw


# ---------------------------------------------------------------------------
# Pure-JAX reference (mirrors the PyTorch module, eval-mode BatchNorm)
# ---------------------------------------------------------------------------
def reference_forward(x_nchw, raw):
    def conv_bn(x, p, pad):
        y = jax.lax.conv_general_dilated(
            x, p["w"], window_strides=(1, 1), padding=[(pad, pad), (pad, pad)],
            dimension_numbers=("NCHW", "OIHW", "NCHW"))
        y = y + p["b"].reshape(1, -1, 1, 1)
        scale = p["gamma"] * jax.lax.rsqrt(p["var"] + BN_EPS)
        return ((y - p["mean"].reshape(1, -1, 1, 1)) * scale.reshape(1, -1, 1, 1)
                + p["beta"].reshape(1, -1, 1, 1))

    x = jax.nn.relu(conv_bn(x_nchw, raw["conv_block"], CONV_PAD))
    for rb in raw["res_blocks"]:
        h = jax.nn.relu(conv_bn(x, rb["c1"], RES_PAD))
        x = jax.nn.relu(conv_bn(h, rb["c2"], RES_PAD) + x)

    B = x.shape[0]
    ph = jax.nn.relu(conv_bn(x, raw["p_head"]["conv"], 0))
    logits = ph.reshape(B, -1) @ raw["p_head"]["w"].T + raw["p_head"]["bias"]
    policy = jax.nn.softmax(logits, axis=1)

    vh = jax.nn.relu(conv_bn(x, raw["v_head"]["conv"], 0))
    hid = jax.nn.relu(vh.reshape(B, -1) @ raw["v_head"]["w1"].T + raw["v_head"]["b1"])
    value = jnp.tanh(hid @ raw["v_head"]["w2"].T + raw["v_head"]["b2"])
    return policy, value


# ---------------------------------------------------------------------------
if __name__ == "__main__":
    key = jax.random.PRNGKey(0)
    k_params, k_x = jax.random.split(key)

    raw = init_raw_params(k_params)
    slab = prepare_kernel_params(raw)
    x = jax.random.normal(k_x, (BATCH, IN_CHANNELS, BOARD_H, BOARD_W), jnp.float32)  # NCHW

    fwd = jax.jit(residual_network_forward)
    policy, value = fwd(x, slab)
    policy = jax.block_until_ready(policy)
    value = jax.block_until_ready(value)

    assert policy.shape == (BATCH, OUT_SIZE)
    assert value.shape == (BATCH, 1)
    # softmax rows sum to 1, tanh output in [-1, 1]
    assert jnp.allclose(jnp.sum(policy, axis=1), 1.0, atol=1e-4)
    assert jnp.all(jnp.abs(value) <= 1.0 + 1e-6)

    # Validate the fused kernel against the pure-JAX reference of the module.
    p_ref, v_ref = reference_forward(x, raw)
    assert jnp.allclose(policy, p_ref, atol=1e-4, rtol=1e-3), float(jnp.max(jnp.abs(policy - p_ref)))
    assert jnp.allclose(value, v_ref, atol=1e-4, rtol=1e-3), float(jnp.max(jnp.abs(value - v_ref)))

    print("KERNEL_OK")
</pallas_src>

<mosaic_0001>
module attributes {stable_mosaic.version = 11 : i64} {
  func.func @kernel(%arg0: memref<8x128xf32, #tpu.memory_space<vmem>>, %arg1: memref<320x128xf32, #tpu.memory_space<vmem>>, %arg2: memref<17x128xf32, #tpu.memory_space<vmem>>) attributes {dimension_semantics = [], scalar_prefetch = 0 : i64, scratch_operands = 0 : i64, tpu.core_type = #tpu.core_type<tc>} {
    %c40 = arith.constant 40 : index
    %c0 = arith.constant 0 : index
    %0 = vector.load %arg1[%c40, %c0] : memref<320x128xf32, #tpu.memory_space<vmem>>, vector<8x128xf32>
    %c112 = arith.constant 112 : index
    %c0_0 = arith.constant 0 : index
    %1 = vector.load %arg1[%c112, %c0_0] : memref<320x128xf32, #tpu.memory_space<vmem>>, vector<128x128xf32>
    %c0_1 = arith.constant 0 : index
    %c0_2 = arith.constant 0 : index
    %2 = vector.load %arg1[%c0_1, %c0_2] : memref<320x128xf32, #tpu.memory_space<vmem>>, vector<8x72xf32>
    %c0_3 = arith.constant 0 : index
    %c72 = arith.constant 72 : index
    %3 = vector.load %arg1[%c0_3, %c72] : memref<320x128xf32, #tpu.memory_space<vmem>>, vector<8x1xf32>
    %c0_4 = arith.constant 0 : index
    %c0_5 = arith.constant 0 : index
    %4 = vector.load %arg0[%c0_4, %c0_5] : memref<8x128xf32, #tpu.memory_space<vmem>>, vector<8x128xf32>
    %c9_i32 = arith.constant 9 : i32
    %5 = tpu.dynamic_rotate %4 by %c9_i32 dim 1 : vector<8x128xf32>, i32 -> vector<8x128xf32>
    %6 = vector.extract_strided_slice %0 {offsets = [0, 0], sizes = [1, 128], strides = [1, 1]} : vector<8x128xf32> to vector<1x128xf32>
    %7 = vector.broadcast %6 : vector<1x128xf32> to vector<8x128xf32>
    %8 = arith.mulf %5, %7 : vector<8x128xf32>
    %c8_i32 = arith.constant 8 : i32
    %9 = tpu.dynamic_rotate %4 by %c8_i32 dim 1 : vector<8x128xf32>, i32 -> vector<8x128xf32>
    %10 = vector.extract_strided_slice %0 {offsets = [1, 0], sizes = [1, 128], strides = [1, 1]} : vector<8x128xf32> to vector<1x128xf32>
    %11 = vector.broadcast %10 : vector<1x128xf32> to vector<8x128xf32>
    %12 = arith.mulf %9, %11 : vector<8x128xf32>
    %c7_i32 = arith.constant 7 : i32
    %13 = tpu.dynamic_rotate %4 by %c7_i32 dim 1 : vector<8x128xf32>, i32 -> vector<8x128xf32>
    %14 = vector.extract_strided_slice %0 {offsets = [2, 0], sizes = [1, 128], strides = [1, 1]} : vector<8x128xf32> to vector<1x128xf32>
    %15 = vector.broadcast %14 : vector<1x128xf32> to vector<8x128xf32>
    %16 = arith.mulf %13, %15 : vector<8x128xf32>
    %c1_i32 = arith.constant 1 : i32
    %17 = tpu.dynamic_rotate %4 by %c1_i32 dim 1 : vector<8x128xf32>, i32 -> vector<8x128xf32>
    %18 = vector.extract_strided_slice %0 {offsets = [3, 0], sizes = [1, 128], strides = [1, 1]} : vector<8x128xf32> to vector<1x128xf32>
    %19 = vector.broadcast %18 : vector<1x128xf32> to vector<8x128xf32>
    %20 = arith.mulf %17, %19 : vector<8x128xf32>
    %c127_i32 = arith.constant 127 : i32
    %21 = tpu.dynamic_rotate %4 by %c127_i32 dim 1 : vector<8x128xf32>, i32 -> vector<8x128xf32>
    %22 = vector.extract_strided_slice %0 {offsets = [4, 0], sizes = [1, 128], strides = [1, 1]} : vector<8x128xf32> to vector<1x128xf32>
    %23 = vector.broadcast %22 : vector<1x128xf32> to vector<8x128xf32>
    %24 = arith.mulf %21, %23 : vector<8x128xf32>
    %c121_i32 = arith.constant 121 : i32
    %25 = tpu.dynamic_rotate %4 by %c121_i32 dim 1 : vector<8x128xf32>, i32 -> vector<8x128xf32>
    %26 = vector.extract_strided_slice %0 {offsets = [5, 0], sizes = [1, 128], strides = [1, 1]} : vector<8x128xf32> to vector<1x128xf32>
    %27 = vector.broadcast %26 : vector<1x128xf32> to vector<8x128xf32>
    %28 = arith.mulf %25, %27 : vector<8x128xf32>
    %c120_i32 = arith.constant 120 : i32
    %29 = tpu.dynamic_rotate %4 by %c120_i32 dim 1 : vector<8x128xf32>, i32 -> vector<8x128xf32>
    %30 = vector.extract_strided_slice %0 {offsets = [6, 0], sizes = [1, 128], strides = [1, 1]} : vector<8x128xf32> to vector<1x128xf32>
    %31 = vector.broadcast %30 : vector<1x128xf32> to vector<8x128xf32>
    %32 = arith.mulf %29, %31 : vector<8x128xf32>
    %c119_i32 = arith.constant 119 : i32
    %33 = tpu.dynamic_rotate %4 by %c119_i32 dim 1 : vector<8x128xf32>, i32 -> vector<8x128xf32>
    %34 = vector.extract_strided_slice %0 {offsets = [7, 0], sizes = [1, 128], strides = [1, 1]} : vector<8x128xf32> to vector<1x128xf32>
    %35 = vector.broadcast %34 : vector<1x128xf32> to vector<8x128xf32>
    %36 = arith.mulf %33, %35 : vector<8x128xf32>
    %37 = tpu.concatenate %8, %12, %16, %20, %4, %24, %28, %32, %36 in 0 : vector<8x128xf32>, vector<8x128xf32>, vector<8x128xf32>, vector<8x128xf32>, vector<8x128xf32>, vector<8x128xf32>, vector<8x128xf32>, vector<8x128xf32>, vector<8x128xf32> -> vector<72x128xf32>
    %cst = arith.constant dense<0.000000e+00> : vector<8x128xf32>
    %38 = tpu.matmul %2, %37, %cst {dimension_numbers = #tpu.dot_dimension_numbers<[1], [0], [0], [1], [0, 0, 1, 1], [], []>} : vector<8x72xf32>, vector<72x128xf32>, vector<8x128xf32> -> vector<8x128xf32>
    %39 = vector.broadcast %3 : vector<8x1xf32> to vector<8x128xf32>
    %40 = arith.addf %38, %39 : vector<8x128xf32>
    %cst_6 = arith.constant 0.000000e+00 : f32
    %41 = vector.broadcast %cst_6 : f32 to vector<8x128xf32>
    %42 = arith.maximumf %40, %41 : vector<8x128xf32>
    %c8 = arith.constant 8 : index
    %c0_7 = arith.constant 0 : index
    %43 = vector.load %arg1[%c8, %c0_7] : memref<320x128xf32, #tpu.memory_space<vmem>>, vector<8x72xf32>
    %c8_8 = arith.constant 8 : index
    %c72_9 = arith.constant 72 : index
    %44 = vector.load %arg1[%c8_8, %c72_9] : memref<320x128xf32, #tpu.memory_space<vmem>>, vector<8x1xf32>
    %c16 = arith.constant 16 : index
    %c0_10 = arith.constant 0 : index
    %45 = vector.load %arg1[%c16, %c0_10] : memref<320x128xf32, #tpu.memory_space<vmem>>, vector<8x72xf32>
    %c16_11 = arith.constant 16 : index
    %c72_12 = arith.constant 72 : index
    %46 = vector.load %arg1[%c16_11, %c72_12] : memref<320x128xf32, #tpu.memory_space<vmem>>, vector<8x1xf32>
    %c9_i32_13 = arith.constant 9 : i32
    %47 = tpu.dynamic_rotate %42 by %c9_i32_13 dim 1 : vector<8x128xf32>, i32 -> vector<8x128xf32>
    %48 = vector.extract_strided_slice %0 {offsets = [0, 0], sizes = [1, 128], strides = [1, 1]} : vector<8x128xf32> to vector<1x128xf32>
    %49 = vector.broadcast %48 : vector<1x128xf32> to vector<8x128xf32>
    %50 = arith.mulf %47, %49 : vector<8x128xf32>
    %c8_i32_14 = arith.constant 8 : i32
    %51 = tpu.dynamic_rotate %42 by %c8_i32_14 dim 1 : vector<8x128xf32>, i32 -> vector<8x128xf32>
    %52 = vector.extract_strided_slice %0 {offsets = [1, 0], sizes = [1, 128], strides = [1, 1]} : vector<8x128xf32> to vector<1x128xf32>
    %53 = vector.broadcast %52 : vector<1x128xf32> to vector<8x128xf32>
    %54 = arith.mulf %51, %53 : vector<8x128xf32>
    %c7_i32_15 = arith.constant 7 : i32
    %55 = tpu.dynamic_rotate %42 by %c7_i32_15 dim 1 : vector<8x128xf32>, i32 -> vector<8x128xf32>
    %56 = vector.extract_strided_slice %0 {offsets = [2, 0], sizes = [1, 128], strides = [1, 1]} : vector<8x128xf32> to vector<1x128xf32>
    %57 = vector.broadcast %56 : vector<1x128xf32> to vector<8x128xf32>
    %58 = arith.mulf %55, %57 : vector<8x128xf32>
    %c1_i32_16 = arith.constant 1 : i32
    %59 = tpu.dynamic_rotate %42 by %c1_i32_16 dim 1 : vector<8x128xf32>, i32 -> vector<8x128xf32>
    %60 = vector.extract_strided_slice %0 {offsets = [3, 0], sizes = [1, 128], strides = [1, 1]} : vector<8x128xf32> to vector<1x128xf32>
    %61 = vector.broadcast %60 : vector<1x128xf32> to vector<8x128xf32>
    %62 = arith.mulf %59, %61 : vector<8x128xf32>
    %c127_i32_17 = arith.constant 127 : i32
    %63 = tpu.dynamic_rotate %42 by %c127_i32_17 dim 1 : vector<8x128xf32>, i32 -> vector<8x128xf32>
    %64 = vector.extract_strided_slice %0 {offsets = [4, 0], sizes = [1, 128], strides = [1, 1]} : vector<8x128xf32> to vector<1x128xf32>
    %65 = vector.broadcast %64 : vector<1x128xf32> to vector<8x128xf32>
    %66 = arith.mulf %63, %65 : vector<8x128xf32>
    %c121_i32_18 = arith.constant 121 : i32
    %67 = tpu.dynamic_rotate %42 by %c121_i32_18 dim 1 : vector<8x128xf32>, i32 -> vector<8x128xf32>
    %68 = vector.extract_strided_slice %0 {offsets = [5, 0], sizes = [1, 128], strides = [1, 1]} : vector<8x128xf32> to vector<1x128xf32>
    %69 = vector.broadcast %68 : vector<1x128xf32> to vector<8x128xf32>
    %70 = arith.mulf %67, %69 : vector<8x128xf32>
    %c120_i32_19 = arith.constant 120 : i32
    %71 = tpu.dynamic_rotate %42 by %c120_i32_19 dim 1 : vector<8x128xf32>, i32 -> vector<8x128xf32>
    %72 = vector.extract_strided_slice %0 {offsets = [6, 0], sizes = [1, 128], strides = [1, 1]} : vector<8x128xf32> to vector<1x128xf32>
    %73 = vector.broadcast %72 : vector<1x128xf32> to vector<8x128xf32>
    %74 = arith.mulf %71, %73 : vector<8x128xf32>
    %c119_i32_20 = arith.constant 119 : i32
    %75 = tpu.dynamic_rotate %42 by %c119_i32_20 dim 1 : vector<8x128xf32>, i32 -> vector<8x128xf32>
    %76 = vector.extract_strided_slice %0 {offsets = [7, 0], sizes = [1, 128], strides = [1, 1]} : vector<8x128xf32> to vector<1x128xf32>
    %77 = vector.broadcast %76 : vector<1x128xf32> to vector<8x128xf32>
    %78 = arith.mulf %75, %77 : vector<8x128xf32>
    %79 = tpu.concatenate %50, %54, %58, %62, %42, %66, %70, %74, %78 in 0 : vector<8x128xf32>, vector<8x128xf32>, vector<8x128xf32>, vector<8x128xf32>, vector<8x128xf32>, vector<8x128xf32>, vector<8x128xf32>, vector<8x128xf32>, vector<8x128xf32> -> vector<72x128xf32>
    %cst_21 = arith.constant dense<0.000000e+00> : vector<8x128xf32>
    %80 = tpu.matmul %43, %79, %cst_21 {dimension_numbers = #tpu.dot_dimension_numbers<[1], [0], [0], [1], [0, 0, 1, 1], [], []>} : vector<8x72xf32>, vector<72x128xf32>, vector<8x128xf32> -> vector<8x128xf32>
    %81 = vector.broadcast %44 : vector<8x1xf32> to vector<8x128xf32>
    %82 = arith.addf %80, %81 : vector<8x128xf32>
    %cst_22 = arith.constant 0.000000e+00 : f32
    %83 = vector.broadcast %cst_22 : f32 to vector<8x128xf32>
    %84 = arith.maximumf %82, %83 : vector<8x128xf32>
    %c9_i32_23 = arith.constant 9 : i32
    %85 = tpu.dynamic_rotate %84 by %c9_i32_23 dim 1 : vector<8x128xf32>, i32 -> vector<8x128xf32>
    %86 = vector.extract_strided_slice %0 {offsets = [0, 0], sizes = [1, 128], strides = [1, 1]} : vector<8x128xf32> to vector<1x128xf32>
    %87 = vector.broadcast %86 : vector<1x128xf32> to vector<8x128xf32>
    %88 = arith.mulf %85, %87 : vector<8x128xf32>
    %c8_i32_24 = arith.constant 8 : i32
    %89 = tpu.dynamic_rotate %84 by %c8_i32_24 dim 1 : vector<8x128xf32>, i32 -> vector<8x128xf32>
    %90 = vector.extract_strided_slice %0 {offsets = [1, 0], sizes = [1, 128], strides = [1, 1]} : vector<8x128xf32> to vector<1x128xf32>
    %91 = vector.broadcast %90 : vector<1x128xf32> to vector<8x128xf32>
    %92 = arith.mulf %89, %91 : vector<8x128xf32>
    %c7_i32_25 = arith.constant 7 : i32
    %93 = tpu.dynamic_rotate %84 by %c7_i32_25 dim 1 : vector<8x128xf32>, i32 -> vector<8x128xf32>
    %94 = vector.extract_strided_slice %0 {offsets = [2, 0], sizes = [1, 128], strides = [1, 1]} : vector<8x128xf32> to vector<1x128xf32>
    %95 = vector.broadcast %94 : vector<1x128xf32> to vector<8x128xf32>
    %96 = arith.mulf %93, %95 : vector<8x128xf32>
    %c1_i32_26 = arith.constant 1 : i32
    %97 = tpu.dynamic_rotate %84 by %c1_i32_26 dim 1 : vector<8x128xf32>, i32 -> vector<8x128xf32>
    %98 = vector.extract_strided_slice %0 {offsets = [3, 0], sizes = [1, 128], strides = [1, 1]} : vector<8x128xf32> to vector<1x128xf32>
    %99 = vector.broadcast %98 : vector<1x128xf32> to vector<8x128xf32>
    %100 = arith.mulf %97, %99 : vector<8x128xf32>
    %c127_i32_27 = arith.constant 127 : i32
    %101 = tpu.dynamic_rotate %84 by %c127_i32_27 dim 1 : vector<8x128xf32>, i32 -> vector<8x128xf32>
    %102 = vector.extract_strided_slice %0 {offsets = [4, 0], sizes = [1, 128], strides = [1, 1]} : vector<8x128xf32> to vector<1x128xf32>
    %103 = vector.broadcast %102 : vector<1x128xf32> to vector<8x128xf32>
    %104 = arith.mulf %101, %103 : vector<8x128xf32>
    %c121_i32_28 = arith.constant 121 : i32
    %105 = tpu.dynamic_rotate %84 by %c121_i32_28 dim 1 : vector<8x128xf32>, i32 -> vector<8x128xf32>
    %106 = vector.extract_strided_slice %0 {offsets = [5, 0], sizes = [1, 128], strides = [1, 1]} : vector<8x128xf32> to vector<1x128xf32>
    %107 = vector.broadcast %106 : vector<1x128xf32> to vector<8x128xf32>
    %108 = arith.mulf %105, %107 : vector<8x128xf32>
    %c120_i32_29 = arith.constant 120 : i32
    %109 = tpu.dynamic_rotate %84 by %c120_i32_29 dim 1 : vector<8x128xf32>, i32 -> vector<8x128xf32>
    %110 = vector.extract_strided_slice %0 {offsets = [6, 0], sizes = [1, 128], strides = [1, 1]} : vector<8x128xf32> to vector<1x128xf32>
    %111 = vector.broadcast %110 : vector<1x128xf32> to vector<8x128xf32>
    %112 = arith.mulf %109, %111 : vector<8x128xf32>
    %c119_i32_30 = arith.constant 119 : i32
    %113 = tpu.dynamic_rotate %84 by %c119_i32_30 dim 1 : vector<8x128xf32>, i32 -> vector<8x128xf32>
    %114 = vector.extract_strided_slice %0 {offsets = [7, 0], sizes = [1, 128], strides = [1, 1]} : vector<8x128xf32> to vector<1x128xf32>
    %115 = vector.broadcast %114 : vector<1x128xf32> to vector<8x128xf32>
    %116 = arith.mulf %113, %115 : vector<8x128xf32>
    %117 = tpu.concatenate %88, %92, %96, %100, %84, %104, %108, %112, %116 in 0 : vector<8x128xf32>, vector<8x128xf32>, vector<8x128xf32>, vector<8x128xf32>, vector<8x128xf32>, vector<8x128xf32>, vector<8x128xf32>, vector<8x128xf32>, vector<8x128xf32> -> vector<72x128xf32>
    %cst_31 = arith.constant dense<0.000000e+00> : vector<8x128xf32>
    %118 = tpu.matmul %45, %117, %cst_31 {dimension_numbers = #tpu.dot_dimension_numbers<[1], [0], [0], [1], [0, 0, 1, 1], [], []>} : vector<8x72xf32>, vector<72x128xf32>, vector<8x128xf32> -> vector<8x128xf32>
    %119 = vector.broadcast %46 : vector<8x1xf32> to vector<8x128xf32>
    %120 = arith.addf %118, %119 : vector<8x128xf32>
    %121 = arith.addf %120, %42 : vector<8x128xf32>
    %cst_32 = arith.constant 0.000000e+00 : f32
    %122 = vector.broadcast %cst_32 : f32 to vector<8x128xf32>
    %123 = arith.maximumf %121, %122 : vector<8x128xf32>
    %c24 = arith.constant 24 : index
    %c0_33 = arith.constant 0 : index
    %124 = vector.load %arg1[%c24, %c0_33] : memref<320x128xf32, #tpu.memory_space<vmem>>, vector<8x72xf32>
    %c24_34 = arith.constant 24 : index
    %c72_35 = arith.constant 72 : index
    %125 = vector.load %arg1[%c24_34, %c72_35] : memref<320x128xf32, #tpu.memory_space<vmem>>, vector<8x1xf32>
    %c32 = arith.constant 32 : index
    %c0_36 = arith.constant 0 : index
    %126 = vector.load %arg1[%c32, %c0_36] : memref<320x128xf32, #tpu.memory_space<vmem>>, vector<8x72xf32>
    %c32_37 = arith.constant 32 : index
    %c72_38 = arith.constant 72 : index
    %127 = vector.load %arg1[%c32_37, %c72_38] : memref<320x128xf32, #tpu.memory_space<vmem>>, vector<8x1xf32>
    %c9_i32_39 = arith.constant 9 : i32
    %128 = tpu.dynamic_rotate %123 by %c9_i32_39 dim 1 : vector<8x128xf32>, i32 -> vector<8x128xf32>
    %129 = vector.extract_strided_slice %0 {offsets = [0, 0], sizes = [1, 128], strides = [1, 1]} : vector<8x128xf32> to vector<1x128xf32>
    %130 = vector.broadcast %129 : vector<1x128xf32> to vector<8x128xf32>
    %131 = arith.mulf %128, %130 : vector<8x128xf32>
    %c8_i32_40 = arith.constant 8 : i32
    %132 = tpu.dynamic_rotate %123 by %c8_i32_40 dim 1 : vector<8x128xf32>, i32 -> vector<8x128xf32>
    %133 = vector.extract_strided_slice %0 {offsets = [1, 0], sizes = [1, 128], strides = [1, 1]} : vector<8x128xf32> to vector<1x128xf32>
    %134 = vector.broadcast %133 : vector<1x128xf32> to vector<8x128xf32>
    %135 = arith.mulf %132, %134 : vector<8x128xf32>
    %c7_i32_41 = arith.constant 7 : i32
    %136 = tpu.dynamic_rotate %123 by %c7_i32_41 dim 1 : vector<8x128xf32>, i32 -> vector<8x128xf32>
    %137 = vector.extract_strided_slice %0 {offsets = [2, 0], sizes = [1, 128], strides = [1, 1]} : vector<8x128xf32> to vector<1x128xf32>
    %138 = vector.broadcast %137 : vector<1x128xf32> to vector<8x128xf32>
    %139 = arith.mulf %136, %138 : vector<8x128xf32>
    %c1_i32_42 = arith.constant 1 : i32
    %140 = tpu.dynamic_rotate %123 by %c1_i32_42 dim 1 : vector<8x128xf32>, i32 -> vector<8x128xf32>
    %141 = vector.extract_strided_slice %0 {offsets = [3, 0], sizes = [1, 128], strides = [1, 1]} : vector<8x128xf32> to vector<1x128xf32>
    %142 = vector.broadcast %141 : vector<1x128xf32> to vector<8x128xf32>
    %143 = arith.mulf %140, %142 : vector<8x128xf32>
    %c127_i32_43 = arith.constant 127 : i32
    %144 = tpu.dynamic_rotate %123 by %c127_i32_43 dim 1 : vector<8x128xf32>, i32 -> vector<8x128xf32>
    %145 = vector.extract_strided_slice %0 {offsets = [4, 0], sizes = [1, 128], strides = [1, 1]} : vector<8x128xf32> to vector<1x128xf32>
    %146 = vector.broadcast %145 : vector<1x128xf32> to vector<8x128xf32>
    %147 = arith.mulf %144, %146 : vector<8x128xf32>
    %c121_i32_44 = arith.constant 121 : i32
    %148 = tpu.dynamic_rotate %123 by %c121_i32_44 dim 1 : vector<8x128xf32>, i32 -> vector<8x128xf32>
    %149 = vector.extract_strided_slice %0 {offsets = [5, 0], sizes = [1, 128], strides = [1, 1]} : vector<8x128xf32> to vector<1x128xf32>
    %150 = vector.broadcast %149 : vector<1x128xf32> to vector<8x128xf32>
    %151 = arith.mulf %148, %150 : vector<8x128xf32>
    %c120_i32_45 = arith.constant 120 : i32
    %152 = tpu.dynamic_rotate %123 by %c120_i32_45 dim 1 : vector<8x128xf32>, i32 -> vector<8x128xf32>
    %153 = vector.extract_strided_slice %0 {offsets = [6, 0], sizes = [1, 128], strides = [1, 1]} : vector<8x128xf32> to vector<1x128xf32>
    %154 = vector.broadcast %153 : vector<1x128xf32> to vector<8x128xf32>
    %155 = arith.mulf %152, %154 : vector<8x128xf32>
    %c119_i32_46 = arith.constant 119 : i32
    %156 = tpu.dynamic_rotate %123 by %c119_i32_46 dim 1 : vector<8x128xf32>, i32 -> vector<8x128xf32>
    %157 = vector.extract_strided_slice %0 {offsets = [7, 0], sizes = [1, 128], strides = [1, 1]} : vector<8x128xf32> to vector<1x128xf32>
    %158 = vector.broadcast %157 : vector<1x128xf32> to vector<8x128xf32>
    %159 = arith.mulf %156, %158 : vector<8x128xf32>
    %160 = tpu.concatenate %131, %135, %139, %143, %123, %147, %151, %155, %159 in 0 : vector<8x128xf32>, vector<8x128xf32>, vector<8x128xf32>, vector<8x128xf32>, vector<8x128xf32>, vector<8x128xf32>, vector<8x128xf32>, vector<8x128xf32>, vector<8x128xf32> -> vector<72x128xf32>
    %cst_47 = arith.constant dense<0.000000e+00> : vector<8x128xf32>
    %161 = tpu.matmul %124, %160, %cst_47 {dimension_numbers = #tpu.dot_dimension_numbers<[1], [0], [0], [1], [0, 0, 1, 1], [], []>} : vector<8x72xf32>, vector<72x128xf32>, vector<8x128xf32> -> vector<8x128xf32>
    %162 = vector.broadcast %125 : vector<8x1xf32> to vector<8x128xf32>
    %163 = arith.addf %161, %162 : vector<8x128xf32>
    %cst_48 = arith.constant 0.000000e+00 : f32
    %164 = vector.broadcast %cst_48 : f32 to vector<8x128xf32>
    %165 = arith.maximumf %163, %164 : vector<8x128xf32>
    %c9_i32_49 = arith.constant 9 : i32
    %166 = tpu.dynamic_rotate %165 by %c9_i32_49 dim 1 : vector<8x128xf32>, i32 -> vector<8x128xf32>
    %167 = vector.extract_strided_slice %0 {offsets = [0, 0], sizes = [1, 128], strides = [1, 1]} : vector<8x128xf32> to vector<1x128xf32>
    %168 = vector.broadcast %167 : vector<1x128xf32> to vector<8x128xf32>
    %169 = arith.mulf %166, %168 : vector<8x128xf32>
    %c8_i32_50 = arith.constant 8 : i32
    %170 = tpu.dynamic_rotate %165 by %c8_i32_50 dim 1 : vector<8x128xf32>, i32 -> vector<8x128xf32>
    %171 = vector.extract_strided_slice %0 {offsets = [1, 0], sizes = [1, 128], strides = [1, 1]} : vector<8x128xf32> to vector<1x128xf32>
    %172 = vector.broadcast %171 : vector<1x128xf32> to vector<8x128xf32>
    %173 = arith.mulf %170, %172 : vector<8x128xf32>
    %c7_i32_51 = arith.constant 7 : i32
    %174 = tpu.dynamic_rotate %165 by %c7_i32_51 dim 1 : vector<8x128xf32>, i32 -> vector<8x128xf32>
    %175 = vector.extract_strided_slice %0 {offsets = [2, 0], sizes = [1, 128], strides = [1, 1]} : vector<8x128xf32> to vector<1x128xf32>
    %176 = vector.broadcast %175 : vector<1x128xf32> to vector<8x128xf32>
    %177 = arith.mulf %174, %176 : vector<8x128xf32>
    %c1_i32_52 = arith.constant 1 : i32
    %178 = tpu.dynamic_rotate %165 by %c1_i32_52 dim 1 : vector<8x128xf32>, i32 -> vector<8x128xf32>
    %179 = vector.extract_strided_slice %0 {offsets = [3, 0], sizes = [1, 128], strides = [1, 1]} : vector<8x128xf32> to vector<1x128xf32>
    %180 = vector.broadcast %179 : vector<1x128xf32> to vector<8x128xf32>
    %181 = arith.mulf %178, %180 : vector<8x128xf32>
    %c127_i32_53 = arith.constant 127 : i32
    %182 = tpu.dynamic_rotate %165 by %c127_i32_53 dim 1 : vector<8x128xf32>, i32 -> vector<8x128xf32>
    %183 = vector.extract_strided_slice %0 {offsets = [4, 0], sizes = [1, 128], strides = [1, 1]} : vector<8x128xf32> to vector<1x128xf32>
    %184 = vector.broadcast %183 : vector<1x128xf32> to vector<8x128xf32>
    %185 = arith.mulf %182, %184 : vector<8x128xf32>
    %c121_i32_54 = arith.constant 121 : i32
    %186 = tpu.dynamic_rotate %165 by %c121_i32_54 dim 1 : vector<8x128xf32>, i32 -> vector<8x128xf32>
    %187 = vector.extract_strided_slice %0 {offsets = [5, 0], sizes = [1, 128], strides = [1, 1]} : vector<8x128xf32> to vector<1x128xf32>
    %188 = vector.broadcast %187 : vector<1x128xf32> to vector<8x128xf32>
    %189 = arith.mulf %186, %188 : vector<8x128xf32>
    %c120_i32_55 = arith.constant 120 : i32
    %190 = tpu.dynamic_rotate %165 by %c120_i32_55 dim 1 : vector<8x128xf32>, i32 -> vector<8x128xf32>
    %191 = vector.extract_strided_slice %0 {offsets = [6, 0], sizes = [1, 128], strides = [1, 1]} : vector<8x128xf32> to vector<1x128xf32>
    %192 = vector.broadcast %191 : vector<1x128xf32> to vector<8x128xf32>
    %193 = arith.mulf %190, %192 : vector<8x128xf32>
    %c119_i32_56 = arith.constant 119 : i32
    %194 = tpu.dynamic_rotate %165 by %c119_i32_56 dim 1 : vector<8x128xf32>, i32 -> vector<8x128xf32>
    %195 = vector.extract_strided_slice %0 {offsets = [7, 0], sizes = [1, 128], strides = [1, 1]} : vector<8x128xf32> to vector<1x128xf32>
    %196 = vector.broadcast %195 : vector<1x128xf32> to vector<8x128xf32>
    %197 = arith.mulf %194, %196 : vector<8x128xf32>
    %198 = tpu.concatenate %169, %173, %177, %181, %165, %185, %189, %193, %197 in 0 : vector<8x128xf32>, vector<8x128xf32>, vector<8x128xf32>, vector<8x128xf32>, vector<8x128xf32>, vector<8x128xf32>, vector<8x128xf32>, vector<8x128xf32>, vector<8x128xf32> -> vector<72x128xf32>
    %cst_57 = arith.constant dense<0.000000e+00> : vector<8x128xf32>
    %199 = tpu.matmul %126, %198, %cst_57 {dimension_numbers = #tpu.dot_dimension_numbers<[1], [0], [0], [1], [0, 0, 1, 1], [], []>} : vector<8x72xf32>, vector<72x128xf32>, vector<8x128xf32> -> vector<8x128xf32>
    %200 = vector.broadcast %127 : vector<8x1xf32> to vector<8x128xf32>
    %201 = arith.addf %199, %200 : vector<8x128xf32>
    %202 = arith.addf %201, %123 : vector<8x128xf32>
    %cst_58 = arith.constant 0.000000e+00 : f32
    %203 = vector.broadcast %cst_58 : f32 to vector<8x128xf32>
    %204 = arith.maximumf %202, %203 : vector<8x128xf32>
    %c240 = arith.constant 240 : index
    %c0_59 = arith.constant 0 : index
    %205 = vector.load %arg1[%c240, %c0_59] : memref<320x128xf32, #tpu.memory_space<vmem>>, vector<2x8xf32>
    %c240_60 = arith.constant 240 : index
    %c8_61 = arith.constant 8 : index
    %206 = vector.load %arg1[%c240_60, %c8_61] : memref<320x128xf32, #tpu.memory_space<vmem>>, vector<2x1xf32>
    %cst_62 = arith.constant dense<0.000000e+00> : vector<2x128xf32>
    %207 = tpu.matmul %205, %204, %cst_62 {dimension_numbers = #tpu.dot_dimension_numbers<[1], [0], [0], [1], [0, 0, 1, 1], [], []>} : vector<2x8xf32>, vector<8x128xf32>, vector<2x128xf32> -> vector<2x128xf32>
    %208 = vector.broadcast %206 : vector<2x1xf32> to vector<2x128xf32>
    %209 = arith.addf %207, %208 : vector<2x128xf32>
    %cst_63 = arith.constant 0.000000e+00 : f32
    %210 = vector.broadcast %cst_63 : f32 to vector<2x128xf32>
    %211 = arith.maximumf %209, %210 : vector<2x128xf32>
    %c48 = arith.constant 48 : index
    %c0_64 = arith.constant 0 : index
    %212 = vector.load %arg1[%c48, %c0_64] : memref<320x128xf32, #tpu.memory_space<vmem>>, vector<16x128xf32>
    %c64 = arith.constant 64 : index
    %c0_65 = arith.constant 0 : index
    %213 = vector.load %arg1[%c64, %c0_65] : memref<320x128xf32, #tpu.memory_space<vmem>>, vector<16x128xf32>
    %214 = vector.extract_strided_slice %211 {offsets = [0, 0], sizes = [1, 128], strides = [1, 1]} : vector<2x128xf32> to vector<1x128xf32>
    %215 = vector.broadcast %214 : vector<1x128xf32> to vector<16x128xf32>
    %216 = arith.mulf %212, %215 : vector<16x128xf32>
    %217 = vector.extract_strided_slice %211 {offsets = [1, 0], sizes = [1, 128], strides = [1, 1]} : vector<2x128xf32> to vector<1x128xf32>
    %218 = vector.broadcast %217 : vector<1x128xf32> to vector<16x128xf32>
    %219 = arith.mulf %213, %218 : vector<16x128xf32>
    %220 = arith.addf %216, %219 : vector<16x128xf32>
    %cst_66 = arith.constant dense<0.000000e+00> : vector<16x128xf32>
    %221 = tpu.matmul %220, %1, %cst_66 {dimension_numbers = #tpu.dot_dimension_numbers<[1], [0], [0], [1], [0, 0, 1, 1], [], []>} : vector<16x128xf32>, vector<128x128xf32>, vector<16x128xf32> -> vector<16x128xf32>
    %c256 = arith.constant 256 : index
    %c0_67 = arith.constant 0 : index
    %222 = vector.load %arg1[%c256, %c0_67] : memref<320x128xf32, #tpu.memory_space<vmem>>, vector<16x1xf32>
    %223 = vector.broadcast %222 : vector<16x1xf32> to vector<16x128xf32>
    %224 = arith.addf %221, %223 : vector<16x128xf32>
    %cst_68 = arith.constant dense<0xFF800000> : vector<128xf32>
    %225 = vector.multi_reduction <maximumf>, %224, %cst_68 [0] : vector<16x128xf32> to vector<128xf32>
    %226 = vector.shape_cast %225 : vector<128xf32> to vector<1x128xf32>
    %227 = vector.broadcast %226 : vector<1x128xf32> to vector<16x128xf32>
    %228 = arith.subf %224, %227 : vector<16x128xf32>
    %229 = math.exp %228 : vector<16x128xf32>
    %cst_69 = arith.constant dense<0.000000e+00> : vector<128xf32>
    %230 = vector.multi_reduction <add>, %229, %cst_69 [0] : vector<16x128xf32> to vector<128xf32>
    %231 = vector.shape_cast %230 : vector<128xf32> to vector<1x128xf32>
    %232 = vector.broadcast %231 : vector<1x128xf32> to vector<16x128xf32>
    %233 = arith.divf %229, %232 : vector<16x128xf32>
    %c248 = arith.constant 248 : index
    %c0_70 = arith.constant 0 : index
    %234 = vector.load %arg1[%c248, %c0_70] : memref<320x128xf32, #tpu.memory_space<vmem>>, vector<1x8xf32>
    %c248_71 = arith.constant 248 : index
    %c8_72 = arith.constant 8 : index
    %235 = vector.load %arg1[%c248_71, %c8_72] : memref<320x128xf32, #tpu.memory_space<vmem>>, vector<1x1xf32>
    %cst_73 = arith.constant dense<0.000000e+00> : vector<1x128xf32>
    %236 = tpu.matmul %234, %204, %cst_73 {dimension_numbers = #tpu.dot_dimension_numbers<[1], [0], [0], [1], [0, 0, 1, 1], [], []>} : vector<1x8xf32>, vector<8x128xf32>, vector<1x128xf32> -> vector<1x128xf32>
    %237 = vector.broadcast %235 : vector<1x1xf32> to vector<1x128xf32>
    %238 = arith.addf %236, %237 : vector<1x128xf32>
    %cst_74 = arith.constant 0.000000e+00 : f32
    %239 = vector.broadcast %cst_74 : f32 to vector<1x128xf32>
    %240 = arith.maximumf %238, %239 : vector<1x128xf32>
    %c80 = arith.constant 80 : index
    %c0_75 = arith.constant 0 : index
    %241 = vector.load %arg1[%c80, %c0_75] : memref<320x128xf32, #tpu.memory_space<vmem>>, vector<32x128xf32>
    %242 = vector.broadcast %240 : vector<1x128xf32> to vector<32x128xf32>
    %243 = arith.mulf %241, %242 : vector<32x128xf32>
    %cst_76 = arith.constant dense<0.000000e+00> : vector<32x128xf32>
    %244 = tpu.matmul %243, %1, %cst_76 {dimension_numbers = #tpu.dot_dimension_numbers<[1], [0], [0], [1], [0, 0, 1, 1], [], []>} : vector<32x128xf32>, vector<128x128xf32>, vector<32x128xf32> -> vector<32x128xf32>
    %c272 = arith.constant 272 : index
    %c0_77 = arith.constant 0 : index
    %245 = vector.load %arg1[%c272, %c0_77] : memref<320x128xf32, #tpu.memory_space<vmem>>, vector<32x1xf32>
    %246 = vector.broadcast %245 : vector<32x1xf32> to vector<32x128xf32>
    %247 = arith.addf %244, %246 : vector<32x128xf32>
    %cst_78 = arith.constant 0.000000e+00 : f32
    %248 = vector.broadcast %cst_78 : f32 to vector<32x128xf32>
    %249 = arith.maximumf %247, %248 : vector<32x128xf32>
    %c304 = arith.constant 304 : index
    %c0_79 = arith.constant 0 : index
    %250 = vector.load %arg1[%c304, %c0_79] : memref<320x128xf32, #tpu.memory_space<vmem>>, vector<1x32xf32>
    %cst_80 = arith.constant dense<0.000000e+00> : vector<1x128xf32>
    %251 = tpu.matmul %250, %249, %cst_80 {dimension_numbers = #tpu.dot_dimension_numbers<[1], [0], [0], [1], [0, 0, 1, 1], [], []>} : vector<1x32xf32>, vector<32x128xf32>, vector<1x128xf32> -> vector<1x128xf32>
    %c312 = arith.constant 312 : index
    %c0_81 = arith.constant 0 : index
    %252 = vector.load %arg1[%c312, %c0_81] : memref<320x128xf32, #tpu.memory_space<vmem>>, vector<1x1xf32>
    %253 = vector.broadcast %252 : vector<1x1xf32> to vector<1x128xf32>
    %254 = arith.addf %251, %253 : vector<1x128xf32>
    %255 = math.tanh %254 : vector<1x128xf32>
    %c0_82 = arith.constant 0 : index
    %c0_83 = arith.constant 0 : index
    %256 = vector.load %arg2[%c0_82, %c0_83] : memref<17x128xf32, #tpu.memory_space<vmem>>, vector<16x128xf32>
    tpu.vector_store %arg2[%c0_82, %c0_83], %233 {strides = array<i32>} : memref<17x128xf32, #tpu.memory_space<vmem>>, vector<16x128xf32>,
    %c16_84 = arith.constant 16 : index
    %c0_85 = arith.constant 0 : index
    %257 = vector.load %arg2[%c16_84, %c0_85] : memref<17x128xf32, #tpu.memory_space<vmem>>, vector<1x128xf32>
    tpu.vector_store %arg2[%c16_84, %c0_85], %255 {strides = array<i32>} : memref<17x128xf32, #tpu.memory_space<vmem>>, vector<1x128xf32>,
    return
  }
}

</mosaic_0001>

<llo_original>
// kernel: residual_network_forward.1
$region0: #{residual_network_forward.1}
  #allocation0 [shape = 'u32[]', space=smem, size = 0x4, offset = 0x4, fixed_abs, tag = 'smem constant byte address 0x4 - core index']
  #allocation1 [shape = 'u32[144,128]{1,0:T(1,128)}', space=vmem, size = 0x12000, scoped, tag = 'internal scratch']
  %s0 = inlined_call_operand.vmem [shape: f32[8,128], index: 0, kind: input, shape index: {}]
  %s1 = inlined_call_operand.hbm [shape: f32[320,128], index: 1, kind: input, shape index: {}]
  %s2 = inlined_call_operand.vmem [shape: f32[17,128], index: 2, kind: output, shape index: {}]
  %s3 = sld [smem:[#allocation0]]
  $region22: #{residual_network_forward.1} parent=0
    _
  %s5 = ssub.s32 1, %s3
  %s6 = scalar_select 0, %s5, %s3
  $region1: #{residual_network_forward.1} parent=0
    #allocation2 [shape = 'u8[163840]{0}', space=vmem, size = 0x28000, scoped, tag = 'input window, operand 1, single buffered']
    #allocation3 [shape = 's32[1]{0}', space=sflag, size = 0x4, scoped, tag = 'scoped memory for residual_network_forward.1']
    %7 = vsyncpa [#allocation3], 0
    // Predicated region
    $region2: #{residual_network_forward.1} parent=1 // pred_check
      _
    $region3: #{residual_network_forward.1} parent=1 // pred_check_branch
      %9 = sbr.rel (0) target = $region5
    $region4: #{residual_network_forward.1} parent=1 // pred_region
      _
    $region5: #{residual_network_forward.1} parent=1 // pred_fallthru
      _
    // Predicated region
    $region6: #{residual_network_forward.1} parent=1 // pred_check
      _
    $region7: #{residual_network_forward.1} parent=1 // pred_check_branch
      %11 = sbr.rel (0) target = $region9
    $region8: #{residual_network_forward.1} parent=1 // pred_region
      %s13 = ssub.s32 5120, 5120
      %14 = vsyncadd [#allocation3], %s13
      %s15 = sshll.u32 [#allocation2], 4
      %s16 = int_to_ptr.vmem [resolvable:$true] %s15
      %21 = dma.hbm_to_vmem [thread:$0]  %s1, 5120, %s16, [#allocation3], 128, 128, 8
    $region9: #{residual_network_forward.1} parent=1 // pred_fallthru
      _
    // Predicated region
    $region10: #{residual_network_forward.1} parent=1 // pred_check
      _
    $region11: #{residual_network_forward.1} parent=1 // pred_check_branch
      %23 = sbr.rel (0) target = $region13
    $region12: #{residual_network_forward.1} parent=1 // pred_region
      %24 = dma.done [#allocation3], 5120
    $region13: #{residual_network_forward.1} parent=1 // pred_fallthru
      _
    %v25 = vld [vmem:[#allocation2 + $0x28] sm:$0xff]
    %v26 = vld [vmem:[#allocation2 + $0x70] sm:$0xff]
    %v27 = vld [vmem:[#allocation2 + $0x78] sm:$0xff]
    %v28 = vld [vmem:[#allocation2 + $0x80] sm:$0xff]
    %v29 = vld [vmem:[#allocation2 + $0x88] sm:$0xff]
    %v30 = vld [vmem:[#allocation2 + $0x90] sm:$0xff]
    %v31 = vld [vmem:[#allocation2 + $0x98] sm:$0xff]
    %v32 = vld [vmem:[#allocation2 + $0xa0] sm:$0xff]
    %v33 = vld [vmem:[#allocation2 + $0xa8] sm:$0xff]
    %v34 = vld [vmem:[#allocation2 + $0xb0] sm:$0xff]
    %v35 = vld [vmem:[#allocation2 + $0xb8] sm:$0xff]
    %v36 = vld [vmem:[#allocation2 + $0xc0] sm:$0xff]
    %v37 = vld [vmem:[#allocation2 + $0xc8] sm:$0xff]
    %v38 = vld [vmem:[#allocation2 + $0xd0] sm:$0xff]
    %v39 = vld [vmem:[#allocation2 + $0xd8] sm:$0xff]
    %v40 = vld [vmem:[#allocation2 + $0xe0] sm:$0xff]
    %v41 = vld [vmem:[#allocation2 + $0xe8] sm:$0xff]
    %v42 = vld [vmem:[#allocation2] sm:$0xff]
    %v43 = vld [vmem:[%s0] sm:$0xff]
    %44 = vrot.lane.b32.xlu0 %v43, 9
    %v45 = vpop.permute.xlu0 %44
    %v46 = vlaneseq
    %v47 = vshrl.u32 %v46, 7
    %v48 = vsub.s32 0, %v47
    %v49 = vrot.slane %v25, %v48
    %v50 = vmul.f32 %v45, %v49
    %51 = vrot.lane.b32.xlu0 %v43, 8
    %v52 = vpop.permute.xlu0 %51
    %v53 = vlaneseq
    %v54 = vshrl.u32 %v53, 7
    %v55 = vsub.s32 1, %v54
    %v56 = vrot.slane %v25, %v55
    %v57 = vmul.f32 %v52, %v56
    %58 = vrot.lane.b32.xlu0 %v43, 7
    %v59 = vpop.permute.xlu0 %58
    %v60 = vlaneseq
    %v61 = vshrl.u32 %v60, 7
    %v62 = vsub.s32 2, %v61
    %v63 = vrot.slane %v25, %v62
    %v64 = vmul.f32 %v59, %v63
    %65 = vrot.lane.b32.xlu0 %v43, 1
    %v66 = vpop.permute.xlu0 %65
    %v67 = vlaneseq
    %v68 = vshrl.u32 %v67, 7
    %v69 = vsub.s32 3, %v68
    %v70 = vrot.slane %v25, %v69
    %v71 = vmul.f32 %v66, %v70
    %72 = vrot.lane.b32.xlu0 %v43, 127
    %v73 = vpop.permute.xlu0 %72
    %v74 = vlaneseq
    %v75 = vshrl.u32 %v74, 7
    %v76 = vsub.s32 4, %v75
    %v77 = vrot.slane %v25, %v76
    %v78 = vmul.f32 %v73, %v77
    %79 = vrot.lane.b32.xlu0 %v43, 121
    %v80 = vpop.permute.xlu0 %79
    %v81 = vlaneseq
    %v82 = vshrl.u32 %v81, 7
    %v83 = vsub.s32 5, %v82
    %v84 = vrot.slane %v25, %v83
    %v85 = vmul.f32 %v80, %v84
    %86 = vrot.lane.b32.xlu0 %v43, 120
    %v87 = vpop.permute.xlu0 %86
    %v88 = vlaneseq
    %v89 = vshrl.u32 %v88, 7
    %v90 = vsub.s32 6, %v89
    %v91 = vrot.slane %v25, %v90
    %v92 = vmul.f32 %v87, %v91
    %93 = vrot.lane.b32.xlu0 %v43, 119
    %v94 = vpop.permute.xlu0 %93
    %v95 = vlaneseq
    %v96 = vshrl.u32 %v95, 7
    %v97 = vsub.s32 7, %v96
    %v98 = vrot.slane %v25, %v97
    %v99 = vmul.f32 %v94, %v98
    %101 = vset.pattern.permute.xlu0 72
    %102 = vperm.xlu0 %101, %v42
    %v103 = vpop.permute.xlu0 %102
    %vm105 = vcmask 588800
    %v106 = vsel %vm105, %v42, 0
    %108 = vmatprep.subr.mxu0 0.0
    %109 = vmatpush1.msra.mxu0 %v50
    %110 = vmatprep.subr.mxu0 0.0
    %111 = vmatpush1.msra.mxu0 %v57
    %112 = vmatprep.subr.mxu0 0.0
    %113 = vmatpush1.msra.mxu0 %v64
    %114 = vmatprep.subr.mxu0 0.0
    %115 = vmatpush1.msra.mxu0 %v71
    %116 = vmatprep.subr.mxu0 0.0
    %117 = vmatpush1.msra.mxu0 %v43
    %118 = vmatprep.subr.mxu0 0.0
    %119 = vmatpush1.msra.mxu0 %v78
    %120 = vmatprep.subr.mxu0 0.0
    %121 = vmatpush1.msra.mxu0 %v85
    %122 = vmatprep.subr.mxu0 0.0
    %123 = vmatpush1.msra.mxu0 %v92
    %124 = vmatprep.subr.mxu0 0.0
    %125 = vmatpush1.msra.mxu0 %v99
    %126 = vmatprep.subr.mxu0 0.0
    %127 = vmatpush1.msra.mxu0 0.0
    %128 = vmatprep.subr.mxu0 0.0
    %129 = vmatpush1.msra.mxu0 0.0
    %130 = vmatprep.subr.mxu0 0.0
    %131 = vmatpush1.msra.mxu0 0.0
    %132 = vmatprep.subr.mxu0 0.0
    %133 = vmatpush1.msra.mxu0 0.0
    %134 = vmatprep.subr.mxu0 0.0
    %135 = vmatpush1.msra.mxu0 0.0
    %136 = vmatprep.subr.mxu0 0.0
    %137 = vmatpush1.msra.mxu0 0.0
    %138 = vmatprep.subr.mxu0 0.0
    %139 = vmatpush1.msra.mxu0 0.0
    %140 = vmatprep.subr.mxu0 0.0
    %141 = vmatpush1.msra.mxu0 0.0
    %142 = vmatprep.subr.mxu0 0.0
    %143 = vmatpush1.msra.mxu0 0.0
    %144 = vmatprep.subr.mxu0 0.0
    %145 = vmatpush1.msra.mxu0 0.0
    %146 = vmatprep.subr.mxu0 0.0
    %147 = vmatpush1.msra.mxu0 0.0
    %148 = vmatprep.subr.mxu0 0.0
    %149 = vmatpush1.msra.mxu0 0.0
    %150 = vmatprep.subr.mxu0 0.0
    %151 = vmatpush1.msra.mxu0 0.0
    %152 = vmatprep.subr.mxu0 0.0
    %153 = vmatpush1.msra.mxu0 0.0
    %154 = vmatprep.subr.mxu0 0.0
    %155 = vmatpush1.msra.mxu0 0.0
    %156 = vmatprep.subr.mxu0 0.0
    %157 = vmatpush1.msra.mxu0 0.0
    %158 = vmatprep.subr.mxu0 0.0
    %159 = vmatpush1.msra.mxu0 0.0
    %160 = vmatprep.subr.mxu0 0.0
    %161 = vmatpush1.msra.mxu0 0.0
    %162 = vmatprep.subr.mxu0 0.0
    %163 = vmatpush1.msra.mxu0 0.0
    %164 = vmatprep.subr.mxu0 0.0
    %165 = vmatpush1.msra.mxu0 0.0
    %166 = vmatprep.subr.mxu0 0.0
    %167 = vmatpush1.msra.mxu0 0.0
    %168 = vmatprep.subr.mxu0 0.0
    %169 = vmatpush1.msra.mxu0 0.0
    %170 = vmatprep.subr.mxu0 0.0
    %171 = vmatpush1.msra.mxu0 0.0
    %172 = vmatprep.mubr.f32.mxu0 0.0
    %173 = vmatmul.mubr.f32.gmra.mrb[0].mxu0 %v106
    %v174 = vpop.f32.mrb[0].mxu0
    %v175 = vadd.f32 %v103, %v174
    %v176 = vpop.f32.mrb[0].mxu0
    %177 = vdwg.mxu0
    %v178 = vmax.f32 %v175, 0.0
    %v179 = vld [vmem:[#allocation2 + $0x8] sm:$0xff]
    %v180 = vld [vmem:[#allocation2 + $0x10] sm:$0xff]
    %181 = vrot.lane.b32.xlu0 %v178, 9
    %v182 = vpop.permute.xlu0 %181
    %v183 = vmul.f32 %v182, %v49
    %184 = vrot.lane.b32.xlu0 %v178, 8
    %v185 = vpop.permute.xlu0 %184
    %v186 = vmul.f32 %v185, %v56
    %187 = vrot.lane.b32.xlu0 %v178, 7
    %v188 = vpop.permute.xlu0 %187
    %v189 = vmul.f32 %v188, %v63
    %190 = vrot.lane.b32.xlu0 %v178, 1
    %v191 = vpop.permute.xlu0 %190
    %v192 = vmul.f32 %v191, %v70
    %193 = vrot.lane.b32.xlu0 %v178, 127
    %v194 = vpop.permute.xlu0 %193
    %v195 = vmul.f32 %v194, %v77
    %196 = vrot.lane.b32.xlu0 %v178, 121
    %v197 = vpop.permute.xlu0 %196
    %v198 = vmul.f32 %v197, %v84
    %199 = vrot.lane.b32.xlu0 %v178, 120
    %v200 = vpop.permute.xlu0 %199
    %v201 = vmul.f32 %v200, %v91
    %202 = vrot.lane.b32.xlu0 %v178, 119
    %v203 = vpop.permute.xlu0 %202
    %v204 = vmul.f32 %v203, %v98
    %206 = vset.pattern.permute.xlu0 72
    %207 = vperm.xlu0 %206, %v179
    %v208 = vpop.permute.xlu0 %207
    %v210 = vsel %vm105, %v179, 0
    %212 = vmatprep.subr.mxu0 0.0
    %213 = vmatpush1.msra.mxu0 %v183
    %214 = vmatprep.subr.mxu0 0.0
    %215 = vmatpush1.msra.mxu0 %v186
    %216 = vmatprep.subr.mxu0 0.0
    %217 = vmatpush1.msra.mxu0 %v189
    %218 = vmatprep.subr.mxu0 0.0
    %219 = vmatpush1.msra.mxu0 %v192
    %220 = vmatprep.subr.mxu0 0.0
    %221 = vmatpush1.msra.mxu0 %v178
    %222 = vmatprep.subr.mxu0 0.0
    %223 = vmatpush1.msra.mxu0 %v195
    %224 = vmatprep.subr.mxu0 0.0
    %225 = vmatpush1.msra.mxu0 %v198
    %226 = vmatprep.subr.mxu0 0.0
    %227 = vmatpush1.msra.mxu0 %v201
    %228 = vmatprep.subr.mxu0 0.0
    %229 = vmatpush1.msra.mxu0 %v204
    %230 = vmatprep.subr.mxu0 0.0
    %231 = vmatpush1.msra.mxu0 0.0
    %232 = vmatprep.subr.mxu0 0.0
    %233 = vmatpush1.msra.mxu0 0.0
    %234 = vmatprep.subr.mxu0 0.0
    %235 = vmatpush1.msra.mxu0 0.0
    %236 = vmatprep.subr.mxu0 0.0
    %237 = vmatpush1.msra.mxu0 0.0
    %238 = vmatprep.subr.mxu0 0.0
    %239 = vmatpush1.msra.mxu0 0.0
    %240 = vmatprep.subr.mxu0 0.0
    %241 = vmatpush1.msra.mxu0 0.0
    %242 = vmatprep.subr.mxu0 0.0
    %243 = vmatpush1.msra.mxu0 0.0
    %244 = vmatprep.subr.mxu0 0.0
    %245 = vmatpush1.msra.mxu0 0.0
    %246 = vmatprep.subr.mxu0 0.0
    %247 = vmatpush1.msra.mxu0 0.0
    %248 = vmatprep.subr.mxu0 0.0
    %249 = vmatpush1.msra.mxu0 0.0
    %250 = vmatprep.subr.mxu0 0.0
    %251 = vmatpush1.msra.mxu0 0.0
    %252 = vmatprep.subr.mxu0 0.0
    %253 = vmatpush1.msra.mxu0 0.0
    %254 = vmatprep.subr.mxu0 0.0
    %255 = vmatpush1.msra.mxu0 0.0
    %256 = vmatprep.subr.mxu0 0.0
    %257 = vmatpush1.msra.mxu0 0.0
    %258 = vmatprep.subr.mxu0 0.0
    %259 = vmatpush1.msra.mxu0 0.0
    %260 = vmatprep.subr.mxu0 0.0
    %261 = vmatpush1.msra.mxu0 0.0
    %262 = vmatprep.subr.mxu0 0.0
    %263 = vmatpush1.msra.mxu0 0.0
    %264 = vmatprep.subr.mxu0 0.0
    %265 = vmatpush1.msra.mxu0 0.0
    %266 = vmatprep.subr.mxu0 0.0
    %267 = vmatpush1.msra.mxu0 0.0
    %268 = vmatprep.subr.mxu0 0.0
    %269 = vmatpush1.msra.mxu0 0.0
    %270 = vmatprep.subr.mxu0 0.0
    %271 = vmatpush1.msra.mxu0 0.0
    %272 = vmatprep.subr.mxu0 0.0
    %273 = vmatpush1.msra.mxu0 0.0
    %274 = vmatprep.subr.mxu0 0.0
    %275 = vmatpush1.msra.mxu0 0.0
    %276 = vmatprep.mubr.f32.mxu0 0.0
    %277 = vmatmul.mubr.f32.gmra.mrb[0].mxu0 %v210
    %v278 = vpop.f32.mrb[0].mxu0
    %v279 = vadd.f32 %v208, %v278
    %v280 = vpop.f32.mrb[0].mxu0
    %281 = vdwg.mxu0
    %v282 = vmax.f32 %v279, 0.0
    %283 = vrot.lane.b32.xlu0 %v282, 9
    %v284 = vpop.permute.xlu0 %283
    %v285 = vmul.f32 %v284, %v49
    %286 = vrot.lane.b32.xlu0 %v282, 8
    %v287 = vpop.permute.xlu0 %286
    %v288 = vmul.f32 %v287, %v56
    %289 = vrot.lane.b32.xlu0 %v282, 7
    %v290 = vpop.permute.xlu0 %289
    %v291 = vmul.f32 %v290, %v63
    %292 = vrot.lane.b32.xlu0 %v282, 1
    %v293 = vpop.permute.xlu0 %292
    %v294 = vmul.f32 %v293, %v70
    %295 = vrot.lane.b32.xlu0 %v282, 127
    %v296 = vpop.permute.xlu0 %295
    %v297 = vmul.f32 %v296, %v77
    %298 = vrot.lane.b32.xlu0 %v282, 121
    %v299 = vpop.permute.xlu0 %298
    %v300 = vmul.f32 %v299, %v84
    %301 = vrot.lane.b32.xlu0 %v282, 120
    %v302 = vpop.permute.xlu0 %301
    %v303 = vmul.f32 %v302, %v91
    %304 = vrot.lane.b32.xlu0 %v282, 119
    %v305 = vpop.permute.xlu0 %304
    %v306 = vmul.f32 %v305, %v98
    %308 = vset.pattern.permute.xlu0 72
    %309 = vperm.xlu0 %308, %v180
    %v310 = vpop.permute.xlu0 %309
    %v312 = vsel %vm105, %v180, 0
    %314 = vmatprep.subr.mxu0 0.0
    %315 = vmatpush1.msra.mxu0 %v285
    %316 = vmatprep.subr.mxu0 0.0
    %317 = vmatpush1.msra.mxu0 %v288
    %318 = vmatprep.subr.mxu0 0.0
    %319 = vmatpush1.msra.mxu0 %v291
    %320 = vmatprep.subr.mxu0 0.0
    %321 = vmatpush1.msra.mxu0 %v294
    %322 = vmatprep.subr.mxu0 0.0
    %323 = vmatpush1.msra.mxu0 %v282
    %324 = vmatprep.subr.mxu0 0.0
    %325 = vmatpush1.msra.mxu0 %v297
    %326 = vmatprep.subr.mxu0 0.0
    %327 = vmatpush1.msra.mxu0 %v300
    %328 = vmatprep.subr.mxu0 0.0
    %329 = vmatpush1.msra.mxu0 %v303
    %330 = vmatprep.subr.mxu0 0.0
    %331 = vmatpush1.msra.mxu0 %v306
    %332 = vmatprep.subr.mxu0 0.0
    %333 = vmatpush1.msra.mxu0 0.0
    %334 = vmatprep.subr.mxu0 0.0
    %335 = vmatpush1.msra.mxu0 0.0
    %336 = vmatprep.subr.mxu0 0.0
    %337 = vmatpush1.msra.mxu0 0.0
    %338 = vmatprep.subr.mxu0 0.0
    %339 = vmatpush1.msra.mxu0 0.0
    %340 = vmatprep.subr.mxu0 0.0
    %341 = vmatpush1.msra.mxu0 0.0
    %342 = vmatprep.subr.mxu0 0.0
    %343 = vmatpush1.msra.mxu0 0.0
    %344 = vmatprep.subr.mxu0 0.0
    %345 = vmatpush1.msra.mxu0 0.0
    %346 = vmatprep.subr.mxu0 0.0
    %347 = vmatpush1.msra.mxu0 0.0
    %348 = vmatprep.subr.mxu0 0.0
    %349 = vmatpush1.msra.mxu0 0.0
    %350 = vmatprep.subr.mxu0 0.0
    %351 = vmatpush1.msra.mxu0 0.0
    %352 = vmatprep.subr.mxu0 0.0
    %353 = vmatpush1.msra.mxu0 0.0
    %354 = vmatprep.subr.mxu0 0.0
    %355 = vmatpush1.msra.mxu0 0.0
    %356 = vmatprep.subr.mxu0 0.0
    %357 = vmatpush1.msra.mxu0 0.0
    %358 = vmatprep.subr.mxu0 0.0
    %359 = vmatpush1.msra.mxu0 0.0
    %360 = vmatprep.subr.mxu0 0.0
    %361 = vmatpush1.msra.mxu0 0.0
    %362 = vmatprep.subr.mxu0 0.0
    %363 = vmatpush1.msra.mxu0 0.0
    %364 = vmatprep.subr.mxu0 0.0
    %365 = vmatpush1.msra.mxu0 0.0
    %366 = vmatprep.subr.mxu0 0.0
    %367 = vmatpush1.msra.mxu0 0.0
    %368 = vmatprep.subr.mxu0 0.0
    %369 = vmatpush1.msra.mxu0 0.0
    %370 = vmatprep.subr.mxu0 0.0
    %371 = vmatpush1.msra.mxu0 0.0
    %372 = vmatprep.subr.mxu0 0.0
    %373 = vmatpush1.msra.mxu0 0.0
    %374 = vmatprep.subr.mxu0 0.0
    %375 = vmatpush1.msra.mxu0 0.0
    %376 = vmatprep.subr.mxu0 0.0
    %377 = vmatpush1.msra.mxu0 0.0
    %378 = vmatprep.mubr.f32.mxu0 0.0
    %379 = vmatmul.mubr.f32.gmra.mrb[0].mxu0 %v312
    %v380 = vpop.f32.mrb[0].mxu0
    %v381 = vadd.f32 %v310, %v380
    %v382 = vpop.f32.mrb[0].mxu0
    %383 = vdwg.mxu0
    %v384 = vadd.f32 %v381, %v178
    %v385 = vmax.f32 %v384, 0.0
    %v386 = vld [vmem:[#allocation2 + $0x18] sm:$0xff]
    %v387 = vld [vmem:[#allocation2 + $0x20] sm:$0xff]
    %388 = vrot.lane.b32.xlu0 %v385, 9
    %v389 = vpop.permute.xlu0 %388
    %v390 = vmul.f32 %v389, %v49
    %391 = vrot.lane.b32.xlu0 %v385, 8
    %v392 = vpop.permute.xlu0 %391
    %v393 = vmul.f32 %v392, %v56
    %394 = vrot.lane.b32.xlu0 %v385, 7
    %v395 = vpop.permute.xlu0 %394
    %v396 = vmul.f32 %v395, %v63
    %397 = vrot.lane.b32.xlu0 %v385, 1
    %v398 = vpop.permute.xlu0 %397
    %v399 = vmul.f32 %v398, %v70
    %400 = vrot.lane.b32.xlu0 %v385, 127
    %v401 = vpop.permute.xlu0 %400
    %v402 = vmul.f32 %v401, %v77
    %403 = vrot.lane.b32.xlu0 %v385, 121
    %v404 = vpop.permute.xlu0 %403
    %v405 = vmul.f32 %v404, %v84
    %406 = vrot.lane.b32.xlu0 %v385, 120
    %v407 = vpop.permute.xlu0 %406
    %v408 = vmul.f32 %v407, %v91
    %409 = vrot.lane.b32.xlu0 %v385, 119
    %v410 = vpop.permute.xlu0 %409
    %v411 = vmul.f32 %v410, %v98
    %413 = vset.pattern.permute.xlu0 72
    %414 = vperm.xlu0 %413, %v386
    %v415 = vpop.permute.xlu0 %414
    %v417 = vsel %vm105, %v386, 0
    %419 = vmatprep.subr.mxu0 0.0
    %420 = vmatpush1.msra.mxu0 %v390
    %421 = vmatprep.subr.mxu0 0.0
    %422 = vmatpush1.msra.mxu0 %v393
    %423 = vmatprep.subr.mxu0 0.0
    %424 = vmatpush1.msra.mxu0 %v396
    %425 = vmatprep.subr.mxu0 0.0
    %426 = vmatpush1.msra.mxu0 %v399
    %427 = vmatprep.subr.mxu0 0.0
    %428 = vmatpush1.msra.mxu0 %v385
    %429 = vmatprep.subr.mxu0 0.0
    %430 = vmatpush1.msra.mxu0 %v402
    %431 = vmatprep.subr.mxu0 0.0
    %432 = vmatpush1.msra.mxu0 %v405
    %433 = vmatprep.subr.mxu0 0.0
    %434 = vmatpush1.msra.mxu0 %v408
    %435 = vmatprep.subr.mxu0 0.0
    %436 = vmatpush1.msra.mxu0 %v411
    %437 = vmatprep.subr.mxu0 0.0
    %438 = vmatpush1.msra.mxu0 0.0
    %439 = vmatprep.subr.mxu0 0.0
    %440 = vmatpush1.msra.mxu0 0.0
    %441 = vmatprep.subr.mxu0 0.0
    %442 = vmatpush1.msra.mxu0 0.0
    %443 = vmatprep.subr.mxu0 0.0
    %444 = vmatpush1.msra.mxu0 0.0
    %445 = vmatprep.subr.mxu0 0.0
    %446 = vmatpush1.msra.mxu0 0.0
    %447 = vmatprep.subr.mxu0 0.0
    %448 = vmatpush1.msra.mxu0 0.0
    %449 = vmatprep.subr.mxu0 0.0
    %450 = vmatpush1.msra.mxu0 0.0
    %451 = vmatprep.subr.mxu0 0.0
    %452 = vmatpush1.msra.mxu0 0.0
    %453 = vmatprep.subr.mxu0 0.0
    %454 = vmatpush1.msra.mxu0 0.0
    %455 = vmatprep.subr.mxu0 0.0
    %456 = vmatpush1.msra.mxu0 0.0
    %457 = vmatprep.subr.mxu0 0.0
    %458 = vmatpush1.msra.mxu0 0.0
    %459 = vmatprep.subr.mxu0 0.0
    %460 = vmatpush1.msra.mxu0 0.0
    %461 = vmatprep.subr.mxu0 0.0
    %462 = vmatpush1.msra.mxu0 0.0
    %463 = vmatprep.subr.mxu0 0.0
    %464 = vmatpush1.msra.mxu0 0.0
    %465 = vmatprep.subr.mxu0 0.0
    %466 = vmatpush1.msra.mxu0 0.0
    %467 = vmatprep.subr.mxu0 0.0
    %468 = vmatpush1.msra.mxu0 0.0
    %469 = vmatprep.subr.mxu0 0.0
    %470 = vmatpush1.msra.mxu0 0.0
    %471 = vmatprep.subr.mxu0 0.0
    %472 = vmatpush1.msra.mxu0 0.0
    %473 = vmatprep.subr.mxu0 0.0
    %474 = vmatpush1.msra.mxu0 0.0
    %475 = vmatprep.subr.mxu0 0.0
    %476 = vmatpush1.msra.mxu0 0.0
    %477 = vmatprep.subr.mxu0 0.0
    %478 = vmatpush1.msra.mxu0 0.0
    %479 = vmatprep.subr.mxu0 0.0
    %480 = vmatpush1.msra.mxu0 0.0
    %481 = vmatprep.subr.mxu0 0.0
    %482 = vmatpush1.msra.mxu0 0.0
    %483 = vmatprep.mubr.f32.mxu0 0.0
    %484 = vmatmul.mubr.f32.gmra.mrb[0].mxu0 %v417
    %v485 = vpop.f32.mrb[0].mxu0
    %v486 = vadd.f32 %v415, %v485
    %v487 = vpop.f32.mrb[0].mxu0
    %488 = vdwg.mxu0
    %v489 = vmax.f32 %v486, 0.0
    %490 = vrot.lane.b32.xlu0 %v489, 9
    %v491 = vpop.permute.xlu0 %490
    %v492 = vmul.f32 %v491, %v49
    %493 = vrot.lane.b32.xlu0 %v489, 8
    %v494 = vpop.permute.xlu0 %493
    %v495 = vmul.f32 %v494, %v56
    %496 = vrot.lane.b32.xlu0 %v489, 7
    %v497 = vpop.permute.xlu0 %496
    %v498 = vmul.f32 %v497, %v63
    %499 = vrot.lane.b32.xlu0 %v489, 1
    %v500 = vpop.permute.xlu0 %499
    %v501 = vmul.f32 %v500, %v70
    %502 = vrot.lane.b32.xlu0 %v489, 127
    %v503 = vpop.permute.xlu0 %502
    %v504 = vmul.f32 %v503, %v77
    %505 = vrot.lane.b32.xlu0 %v489, 121
    %v506 = vpop.permute.xlu0 %505
    %v507 = vmul.f32 %v506, %v84
    %508 = vrot.lane.b32.xlu0 %v489, 120
    %v509 = vpop.permute.xlu0 %508
    %v510 = vmul.f32 %v509, %v91
    %511 = vrot.lane.b32.xlu0 %v489, 119
    %v512 = vpop.permute.xlu0 %511
    %v513 = vmul.f32 %v512, %v98
    %515 = vset.pattern.permute.xlu0 72
    %516 = vperm.xlu0 %515, %v387
    %v517 = vpop.permute.xlu0 %516
    %v519 = vsel %vm105, %v387, 0
    %521 = vmatprep.subr.mxu0 0.0
    %522 = vmatpush1.msra.mxu0 %v492
    %523 = vmatprep.subr.mxu0 0.0
    %524 = vmatpush1.msra.mxu0 %v495
    %525 = vmatprep.subr.mxu0 0.0
    %526 = vmatpush1.msra.mxu0 %v498
    %527 = vmatprep.subr.mxu0 0.0
    %528 = vmatpush1.msra.mxu0 %v501
    %529 = vmatprep.subr.mxu0 0.0
    %530 = vmatpush1.msra.mxu0 %v489
    %531 = vmatprep.subr.mxu0 0.0
    %532 = vmatpush1.msra.mxu0 %v504
    %533 = vmatprep.subr.mxu0 0.0
    %534 = vmatpush1.msra.mxu0 %v507
    %535 = vmatprep.subr.mxu0 0.0
    %536 = vmatpush1.msra.mxu0 %v510
    %537 = vmatprep.subr.mxu0 0.0
    %538 = vmatpush1.msra.mxu0 %v513
    %539 = vmatprep.subr.mxu0 0.0
    %540 = vmatpush1.msra.mxu0 0.0
    %541 = vmatprep.subr.mxu0 0.0
    %542 = vmatpush1.msra.mxu0 0.0
    %543 = vmatprep.subr.mxu0 0.0
    %544 = vmatpush1.msra.mxu0 0.0
    %545 = vmatprep.subr.mxu0 0.0
    %546 = vmatpush1.msra.mxu0 0.0
    %547 = vmatprep.subr.mxu0 0.0
    %548 = vmatpush1.msra.mxu0 0.0
    %549 = vmatprep.subr.mxu0 0.0
    %550 = vmatpush1.msra.mxu0 0.0
    %551 = vmatprep.subr.mxu0 0.0
    %552 = vmatpush1.msra.mxu0 0.0
    %553 = vmatprep.subr.mxu0 0.0
    %554 = vmatpush1.msra.mxu0 0.0
    %555 = vmatprep.subr.mxu0 0.0
    %556 = vmatpush1.msra.mxu0 0.0
    %557 = vmatprep.subr.mxu0 0.0
    %558 = vmatpush1.msra.mxu0 0.0
    %559 = vmatprep.subr.mxu0 0.0
    %560 = vmatpush1.msra.mxu0 0.0
    %561 = vmatprep.subr.mxu0 0.0
    %562 = vmatpush1.msra.mxu0 0.0
    %563 = vmatprep.subr.mxu0 0.0
    %564 = vmatpush1.msra.mxu0 0.0
    %565 = vmatprep.subr.mxu0 0.0
    %566 = vmatpush1.msra.mxu0 0.0
    %567 = vmatprep.subr.mxu0 0.0
    %568 = vmatpush1.msra.mxu0 0.0
    %569 = vmatprep.subr.mxu0 0.0
    %570 = vmatpush1.msra.mxu0 0.0
    %571 = vmatprep.subr.mxu0 0.0
    %572 = vmatpush1.msra.mxu0 0.0
    %573 = vmatprep.subr.mxu0 0.0
    %574 = vmatpush1.msra.mxu0 0.0
    %575 = vmatprep.subr.mxu0 0.0
    %576 = vmatpush1.msra.mxu0 0.0
    %577 = vmatprep.subr.mxu0 0.0
    %578 = vmatpush1.msra.mxu0 0.0
    %579 = vmatprep.subr.mxu0 0.0
    %580 = vmatpush1.msra.mxu0 0.0
    %581 = vmatprep.subr.mxu0 0.0
    %582 = vmatpush1.msra.mxu0 0.0
    %583 = vmatprep.subr.mxu0 0.0
    %584 = vmatpush1.msra.mxu0 0.0
    %585 = vmatprep.mubr.f32.mxu0 0.0
    %586 = vmatmul.mubr.f32.gmra.mrb[0].mxu0 %v519
    %v587 = vpop.f32.mrb[0].mxu0
    %v588 = vadd.f32 %v517, %v587
    %v589 = vpop.f32.mrb[0].mxu0
    %590 = vdwg.mxu0
    %v591 = vadd.f32 %v588, %v385
    %v592 = vmax.f32 %v591, 0.0
    %v593 = vld [vmem:[#allocation2 + $0xf0] sm:$0x3]
    %595 = vset.pattern.permute.xlu0 8
    %596 = vperm.xlu0 %595, %v593
    %v597 = vpop.permute.xlu0 %596
    %vm599 = vcmask 64512
    %v600 = vsel %vm599, %v593, 0
    %602 = vmatprep.subr.mxu0 0.0
    %603 = vmatpush1.msra.mxu0 %v592
    %604 = vmatprep.subr.mxu0 0.0
    %605 = vmatpush1.msra.mxu0 0.0
    %606 = vmatprep.subr.mxu0 0.0
    %607 = vmatpush1.msra.mxu0 0.0
    %608 = vmatprep.subr.mxu0 0.0
    %609 = vmatpush1.msra.mxu0 0.0
    %610 = vmatprep.subr.mxu0 0.0
    %611 = vmatpush1.msra.mxu0 0.0
    %612 = vmatprep.subr.mxu0 0.0
    %613 = vmatpush1.msra.mxu0 0.0
    %614 = vmatprep.subr.mxu0 0.0
    %615 = vmatpush1.msra.mxu0 0.0
    %616 = vmatprep.subr.mxu0 0.0
    %617 = vmatpush1.msra.mxu0 0.0
    %618 = vmatprep.subr.mxu0 0.0
    %619 = vmatpush1.msra.mxu0 0.0
    %620 = vmatprep.subr.mxu0 0.0
    %621 = vmatpush1.msra.mxu0 0.0
    %622 = vmatprep.subr.mxu0 0.0
    %623 = vmatpush1.msra.mxu0 0.0
    %624 = vmatprep.subr.mxu0 0.0
    %625 = vmatpush1.msra.mxu0 0.0
    %626 = vmatprep.subr.mxu0 0.0
    %627 = vmatpush1.msra.mxu0 0.0
    %628 = vmatprep.subr.mxu0 0.0
    %629 = vmatpush1.msra.mxu0 0.0
    %630 = vmatprep.subr.mxu0 0.0
    %631 = vmatpush1.msra.mxu0 0.0
    %632 = vmatprep.subr.mxu0 0.0
    %633 = vmatpush1.msra.mxu0 0.0
    %634 = vmatprep.subr.mxu0 0.0
    %635 = vmatpush1.msra.mxu0 0.0
    %636 = vmatprep.subr.mxu0 0.0
    %637 = vmatpush1.msra.mxu0 0.0
    %638 = vmatprep.subr.mxu0 0.0
    %639 = vmatpush1.msra.mxu0 0.0
    %640 = vmatprep.subr.mxu0 0.0
    %641 = vmatpush1.msra.mxu0 0.0
    %642 = vmatprep.subr.mxu0 0.0
    %643 = vmatpush1.msra.mxu0 0.0
    %644 = vmatprep.subr.mxu0 0.0
    %645 = vmatpush1.msra.mxu0 0.0
    %646 = vmatprep.subr.mxu0 0.0
    %647 = vmatpush1.msra.mxu0 0.0
    %648 = vmatprep.subr.mxu0 0.0
    %649 = vmatpush1.msra.mxu0 0.0
    %650 = vmatprep.subr.mxu0 0.0
    %651 = vmatpush1.msra.mxu0 0.0
    %652 = vmatprep.subr.mxu0 0.0
    %653 = vmatpush1.msra.mxu0 0.0
    %654 = vmatprep.subr.mxu0 0.0
    %655 = vmatpush1.msra.mxu0 0.0
    %656 = vmatprep.subr.mxu0 0.0
    %657 = vmatpush1.msra.mxu0 0.0
    %658 = vmatprep.subr.mxu0 0.0
    %659 = vmatpush1.msra.mxu0 0.0
    %660 = vmatprep.subr.mxu0 0.0
    %661 = vmatpush1.msra.mxu0 0.0
    %662 = vmatprep.subr.mxu0 0.0
    %663 = vmatpush1.msra.mxu0 0.0
    %664 = vmatprep.subr.mxu0 0.0
    %665 = vmatpush1.msra.mxu0 0.0
    %666 = vmatprep.mubr.f32.mxu0 0.0
    %667 = vmatmul.mubr.f32.gmra.mrb[0].mxu0 %v600
    %v668 = vpop.f32.mrb[0].mxu0
    %v669 = vadd.f32 %v597, %v668
    %v670 = vpop.f32.mrb[0].mxu0
    %671 = vdwg.mxu0
    %v672 = vmax.f32 %v669, 0.0
    %v673 = vld [vmem:[#allocation2 + $0x30] sm:$0xff]
    %v674 = vld [vmem:[#allocation2 + $0x38] sm:$0xff]
    %v675 = vld [vmem:[#allocation2 + $0x40] sm:$0xff]
    %v676 = vld [vmem:[#allocation2 + $0x48] sm:$0xff]
    %v677 = vlaneseq
    %v678 = vshrl.u32 %v677, 7
    %v679 = vsub.s32 0, %v678
    %v680 = vrot.slane %v672, %v679
    %v681 = vmul.f32 %v673, %v680
    %v682 = vmul.f32 %v674, %v680
    %v683 = vlaneseq
    %v684 = vshrl.u32 %v683, 7
    %v685 = vsub.s32 1, %v684
    %v686 = vrot.slane %v672, %v685
    %v687 = vmul.f32 %v675, %v686
    %v688 = vmul.f32 %v676, %v686
    %v689 = vadd.f32 %v681, %v687
    %v690 = vadd.f32 %v682, %v688
    %v691 = vld [vmem:[#allocation2 + $0x100] sm:$0xff]
    %v692 = vld [vmem:[#allocation2 + $0x108] sm:$0xff]
    %694 = vset.pattern.permute.xlu0 0
    %695 = vperm.xlu0 %694, %v691
    %v696 = vpop.permute.xlu0 %695
    %699 = vset.pattern.permute.xlu0 0
    %700 = vperm.xlu0 %699, %v692
    %v701 = vpop.permute.xlu0 %700
    %703 = vmatprep.subr.mxu0 0.0
    %704 = vmatpush1.msra.mxu0 %v26
    %705 = vmatprep.subr.mxu0 0.0
    %706 = vmatpush1.msra.mxu0 %v27
    %707 = vmatprep.subr.mxu0 0.0
    %708 = vmatpush1.msra.mxu0 %v28
    %709 = vmatprep.subr.mxu0 0.0
    %710 = vmatpush1.msra.mxu0 %v29
    %711 = vmatprep.subr.mxu0 0.0
    %712 = vmatpush1.msra.mxu0 %v30
    %713 = vmatprep.subr.mxu0 0.0
    %714 = vmatpush1.msra.mxu0 %v31
    %715 = vmatprep.subr.mxu0 0.0
    %716 = vmatpush1.msra.mxu0 %v32
    %717 = vmatprep.subr.mxu0 0.0
    %718 = vmatpush1.msra.mxu0 %v33
    %719 = vmatprep.subr.mxu0 0.0
    %720 = vmatpush1.msra.mxu0 %v34
    %721 = vmatprep.subr.mxu0 0.0
    %722 = vmatpush1.msra.mxu0 %v35
    %723 = vmatprep.subr.mxu0 0.0
    %724 = vmatpush1.msra.mxu0 %v36
    %725 = vmatprep.subr.mxu0 0.0
    %726 = vmatpush1.msra.mxu0 %v37
    %727 = vmatprep.subr.mxu0 0.0
    %728 = vmatpush1.msra.mxu0 %v38
    %729 = vmatprep.subr.mxu0 0.0
    %730 = vmatpush1.msra.mxu0 %v39
    %731 = vmatprep.subr.mxu0 0.0
    %732 = vmatpush1.msra.mxu0 %v40
    %733 = vmatprep.subr.mxu0 0.0
    %734 = vmatpush1.msra.mxu0 %v41
    %735 = vmatprep.subr.mxu0 0.0
    %736 = vmatpush1.msra.mxu0 0.0
    %737 = vmatprep.subr.mxu0 0.0
    %738 = vmatpush1.msra.mxu0 0.0
    %739 = vmatprep.subr.mxu0 0.0
    %740 = vmatpush1.msra.mxu0 0.0
    %741 = vmatprep.subr.mxu0 0.0
    %742 = vmatpush1.msra.mxu0 0.0
    %743 = vmatprep.subr.mxu0 0.0
    %744 = vmatpush1.msra.mxu0 0.0
    %745 = vmatprep.subr.mxu0 0.0
    %746 = vmatpush1.msra.mxu0 0.0
    %747 = vmatprep.subr.mxu0 0.0
    %748 = vmatpush1.msra.mxu0 0.0
    %749 = vmatprep.subr.mxu0 0.0
    %750 = vmatpush1.msra.mxu0 0.0
    %751 = vmatprep.subr.mxu0 0.0
    %752 = vmatpush1.msra.mxu0 0.0
    %753 = vmatprep.subr.mxu0 0.0
    %754 = vmatpush1.msra.mxu0 0.0
    %755 = vmatprep.subr.mxu0 0.0
    %756 = vmatpush1.msra.mxu0 0.0
    %757 = vmatprep.subr.mxu0 0.0
    %758 = vmatpush1.msra.mxu0 0.0
    %759 = vmatprep.subr.mxu0 0.0
    %760 = vmatpush1.msra.mxu0 0.0
    %761 = vmatprep.subr.mxu0 0.0
    %762 = vmatpush1.msra.mxu0 0.0
    %763 = vmatprep.subr.mxu0 0.0
    %764 = vmatpush1.msra.mxu0 0.0
    %765 = vmatprep.subr.mxu0 0.0
    %766 = vmatpush1.msra.mxu0 0.0
    %767 = vmatprep.mubr.f32.mxu0 0.0
    %768 = vmatmul.mubr.f32.gmra.mrb[0].mxu0 %v689
    %v769 = vpop.f32.mrb[0].mxu0
    %v770 = vadd.f32 %v696, %v769
    %v771 = vpop.f32.mrb[0].mxu0
    %772 = vmatprep.mubr.f32.mxu0 0.0
    %773 = vmatmul.mubr.f32.gmra.mrb[0].mxu0 %v690
    %v774 = vpop.f32.mrb[0].mxu0
    %v775 = vadd.f32 %v701, %v774
    %v776 = vpop.f32.mrb[0].mxu0
    %777 = vdwg.mxu0
    %v778 = vmax.f32 %v770, %v775
    %v779 = vrot.slane %v778, 4
    %v780 = vmax.f32 %v778, %v779
    %v781 = vrot.slane %v780, 2
    %v782 = vmax.f32 %v780, %v781
    %v783 = vrot.slane %v782, 1
    %v784 = vmax.f32 %v782, %v783
    %v785 = vsub.f32 %v770, %v784
    %v786 = vsub.f32 %v775, %v784
    %v787 = vmul.f32 %v785, 1.442695
    %v788 = vpow.pop %v787
    %v789 = vmul.f32 %v786, 1.442695
    %v790 = vpow.pop %v789
    %v791 = vadd.f32 %v788, %v790
    %v792 = vrot.slane %v791, 4
    %v793 = vadd.f32 %v791, %v792
    %v794 = vrot.slane %v793, 2
    %v795 = vadd.f32 %v793, %v794
    %v796 = vrot.slane %v795, 1
    %v797 = vadd.f32 %v795, %v796
    %v798 = vrcp.pop %v797
    %v799 = vmul.f32 %v788, %v798
    %v800 = vmul.f32 %v790, %v798
    %v801 = vld [vmem:[#allocation2 + $0xf8] sm:$0x1]
    %803 = vset.pattern.permute.xlu0 8
    %804 = vperm.xlu0 %803, %v801
    %v805 = vpop.permute.xlu0 %804
    %v807 = vsel %vm599, %v801, 0
    %809 = vmatprep.subr.mxu0 0.0
    %810 = vmatpush1.msra.mxu0 %v592
    %811 = vmatprep.subr.mxu0 0.0
    %812 = vmatpush1.msra.mxu0 0.0
    %813 = vmatprep.subr.mxu0 0.0
    %814 = vmatpush1.msra.mxu0 0.0
    %815 = vmatprep.subr.mxu0 0.0
    %816 = vmatpush1.msra.mxu0 0.0
    %817 = vmatprep.subr.mxu0 0.0
    %818 = vmatpush1.msra.mxu0 0.0
    %819 = vmatprep.subr.mxu0 0.0
    %820 = vmatpush1.msra.mxu0 0.0
    %821 = vmatprep.subr.mxu0 0.0
    %822 = vmatpush1.msra.mxu0 0.0
    %823 = vmatprep.subr.mxu0 0.0
    %824 = vmatpush1.msra.mxu0 0.0
    %825 = vmatprep.subr.mxu0 0.0
    %826 = vmatpush1.msra.mxu0 0.0
    %827 = vmatprep.subr.mxu0 0.0
    %828 = vmatpush1.msra.mxu0 0.0
    %829 = vmatprep.subr.mxu0 0.0
    %830 = vmatpush1.msra.mxu0 0.0
    %831 = vmatprep.subr.mxu0 0.0
    %832 = vmatpush1.msra.mxu0 0.0
    %833 = vmatprep.subr.mxu0 0.0
    %834 = vmatpush1.msra.mxu0 0.0
    %835 = vmatprep.subr.mxu0 0.0
    %836 = vmatpush1.msra.mxu0 0.0
    %837 = vmatprep.subr.mxu0 0.0
    %838 = vmatpush1.msra.mxu0 0.0
    %839 = vmatprep.subr.mxu0 0.0
    %840 = vmatpush1.msra.mxu0 0.0
    %841 = vmatprep.subr.mxu0 0.0
    %842 = vmatpush1.msra.mxu0 0.0
    %843 = vmatprep.subr.mxu0 0.0
    %844 = vmatpush1.msra.mxu0 0.0
    %845 = vmatprep.subr.mxu0 0.0
    %846 = vmatpush1.msra.mxu0 0.0
    %847 = vmatprep.subr.mxu0 0.0
    %848 = vmatpush1.msra.mxu0 0.0
    %849 = vmatprep.subr.mxu0 0.0
    %850 = vmatpush1.msra.mxu0 0.0
    %851 = vmatprep.subr.mxu0 0.0
    %852 = vmatpush1.msra.mxu0 0.0
    %853 = vmatprep.subr.mxu0 0.0
    %854 = vmatpush1.msra.mxu0 0.0
    %855 = vmatprep.subr.mxu0 0.0
    %856 = vmatpush1.msra.mxu0 0.0
    %857 = vmatprep.subr.mxu0 0.0
    %858 = vmatpush1.msra.mxu0 0.0
    %859 = vmatprep.subr.mxu0 0.0
    %860 = vmatpush1.msra.mxu0 0.0
    %861 = vmatprep.subr.mxu0 0.0
    %862 = vmatpush1.msra.mxu0 0.0
    %863 = vmatprep.subr.mxu0 0.0
    %864 = vmatpush1.msra.mxu0 0.0
    %865 = vmatprep.subr.mxu0 0.0
    %866 = vmatpush1.msra.mxu0 0.0
    %867 = vmatprep.subr.mxu0 0.0
    %868 = vmatpush1.msra.mxu0 0.0
    %869 = vmatprep.subr.mxu0 0.0
    %870 = vmatpush1.msra.mxu0 0.0
    %871 = vmatprep.subr.mxu0 0.0
    %872 = vmatpush1.msra.mxu0 0.0
    %873 = vmatprep.mubr.f32.mxu0 0.0
    %874 = vmatmul.mubr.f32.gmra.mrb[0].mxu0 %v807
    %v875 = vpop.f32.mrb[0].mxu0
    %v876 = vadd.f32 %v805, %v875
    %v877 = vpop.f32.mrb[0].mxu0
    %878 = vdwg.mxu0
    %v879 = vmax.f32 %v876, 0.0
    %v880 = vld [vmem:[#allocation2 + $0x50] sm:$0xff]
    %v881 = vld [vmem:[#allocation2 + $0x58] sm:$0xff]
    %v882 = vld [vmem:[#allocation2 + $0x60] sm:$0xff]
    %v883 = vld [vmem:[#allocation2 + $0x68] sm:$0xff]
    %v884 = vlaneseq
    %v885 = vshrl.u32 %v884, 7
    %v886 = vsub.s32 0, %v885
    %v887 = vrot.slane %v879, %v886
    %v888 = vmul.f32 %v880, %v887
    %v889 = vmul.f32 %v881, %v887
    %v890 = vmul.f32 %v882, %v887
    %v891 = vmul.f32 %v883, %v887
    %v892 = vld [vmem:[#allocation2 + $0x110] sm:$0xff]
    %v893 = vld [vmem:[#allocation2 + $0x118] sm:$0xff]
    %v894 = vld [vmem:[#allocation2 + $0x120] sm:$0xff]
    %v895 = vld [vmem:[#allocation2 + $0x128] sm:$0xff]
    %897 = vset.pattern.permute.xlu0 0
    %898 = vperm.xlu0 %897, %v892
    %v899 = vpop.permute.xlu0 %898
    %902 = vset.pattern.permute.xlu0 0
    %903 = vperm.xlu0 %902, %v893
    %v904 = vpop.permute.xlu0 %903
    %907 = vset.pattern.permute.xlu0 0
    %908 = vperm.xlu0 %907, %v894
    %v909 = vpop.permute.xlu0 %908
    %912 = vset.pattern.permute.xlu0 0
    %913 = vperm.xlu0 %912, %v895
    %v914 = vpop.permute.xlu0 %913
    %916 = vmatprep.subr.mxu0 0.0
    %917 = vmatpush1.msra.mxu0 %v26
    %918 = vmatprep.subr.mxu0 0.0
    %919 = vmatpush1.msra.mxu0 %v27
    %920 = vmatprep.subr.mxu0 0.0
    %921 = vmatpush1.msra.mxu0 %v28
    %922 = vmatprep.subr.mxu0 0.0
    %923 = vmatpush1.msra.mxu0 %v29
    %924 = vmatprep.subr.mxu0 0.0
    %925 = vmatpush1.msra.mxu0 %v30
    %926 = vmatprep.subr.mxu0 0.0
    %927 = vmatpush1.msra.mxu0 %v31
    %928 = vmatprep.subr.mxu0 0.0
    %929 = vmatpush1.msra.mxu0 %v32
    %930 = vmatprep.subr.mxu0 0.0
    %931 = vmatpush1.msra.mxu0 %v33
    %932 = vmatprep.subr.mxu0 0.0
    %933 = vmatpush1.msra.mxu0 %v34
    %934 = vmatprep.subr.mxu0 0.0
    %935 = vmatpush1.msra.mxu0 %v35
    %936 = vmatprep.subr.mxu0 0.0
    %937 = vmatpush1.msra.mxu0 %v36
    %938 = vmatprep.subr.mxu0 0.0
    %939 = vmatpush1.msra.mxu0 %v37
    %940 = vmatprep.subr.mxu0 0.0
    %941 = vmatpush1.msra.mxu0 %v38
    %942 = vmatprep.subr.mxu0 0.0
    %943 = vmatpush1.msra.mxu0 %v39
    %944 = vmatprep.subr.mxu0 0.0
    %945 = vmatpush1.msra.mxu0 %v40
    %946 = vmatprep.subr.mxu0 0.0
    %947 = vmatpush1.msra.mxu0 %v41
    %948 = vmatprep.subr.mxu0 0.0
    %949 = vmatpush1.msra.mxu0 0.0
    %950 = vmatprep.subr.mxu0 0.0
    %951 = vmatpush1.msra.mxu0 0.0
    %952 = vmatprep.subr.mxu0 0.0
    %953 = vmatpush1.msra.mxu0 0.0
    %954 = vmatprep.subr.mxu0 0.0
    %955 = vmatpush1.msra.mxu0 0.0
    %956 = vmatprep.subr.mxu0 0.0
    %957 = vmatpush1.msra.mxu0 0.0
    %958 = vmatprep.subr.mxu0 0.0
    %959 = vmatpush1.msra.mxu0 0.0
    %960 = vmatprep.subr.mxu0 0.0
    %961 = vmatpush1.msra.mxu0 0.0
    %962 = vmatprep.subr.mxu0 0.0
    %963 = vmatpush1.msra.mxu0 0.0
    %964 = vmatprep.subr.mxu0 0.0
    %965 = vmatpush1.msra.mxu0 0.0
    %966 = vmatprep.subr.mxu0 0.0
    %967 = vmatpush1.msra.mxu0 0.0
    %968 = vmatprep.subr.mxu0 0.0
    %969 = vmatpush1.msra.mxu0 0.0
    %970 = vmatprep.subr.mxu0 0.0
    %971 = vmatpush1.msra.mxu0 0.0
    %972 = vmatprep.subr.mxu0 0.0
    %973 = vmatpush1.msra.mxu0 0.0
    %974 = vmatprep.subr.mxu0 0.0
    %975 = vmatpush1.msra.mxu0 0.0
    %976 = vmatprep.subr.mxu0 0.0
    %977 = vmatpush1.msra.mxu0 0.0
    %978 = vmatprep.subr.mxu0 0.0
    %979 = vmatpush1.msra.mxu0 0.0
    %980 = vmatprep.mubr.f32.mxu0 0.0
    %981 = vmatmul.mubr.f32.gmra.mrb[0].mxu0 %v888
    %v982 = vpop.f32.mrb[0].mxu0
    %v983 = vadd.f32 %v899, %v982
    %v984 = vpop.f32.mrb[0].mxu0
    %985 = vmatprep.mubr.f32.mxu0 0.0
    %986 = vmatmul.mubr.f32.gmra.mrb[0].mxu0 %v889
    %v987 = vpop.f32.mrb[0].mxu0
    %v988 = vadd.f32 %v904, %v987
    %v989 = vpop.f32.mrb[0].mxu0
    %990 = vmatprep.mubr.f32.mxu0 0.0
    %991 = vmatmul.mubr.f32.gmra.mrb[0].mxu0 %v890
    %v992 = vpop.f32.mrb[0].mxu0
    %v993 = vadd.f32 %v909, %v992
    %v994 = vpop.f32.mrb[0].mxu0
    %995 = vmatprep.mubr.f32.mxu0 0.0
    %996 = vmatmul.mubr.f32.gmra.mrb[0].mxu0 %v891
    %v997 = vpop.f32.mrb[0].mxu0
    %v998 = vadd.f32 %v914, %v997
    %v999 = vpop.f32.mrb[0].mxu0
    %1000 = vdwg.mxu0
    %v1001 = vmax.f32 %v983, 0.0
    %v1002 = vmax.f32 %v988, 0.0
    %v1003 = vmax.f32 %v993, 0.0
    %v1004 = vmax.f32 %v998, 0.0
    %v1005 = vld [vmem:[#allocation2 + $0x130] sm:$0x1]
    %v1006 = vld [vmem:[#allocation2 + $0x138] sm:$0x1]
    %1008 = vset.pattern.permute.xlu0 0
    %1009 = vperm.xlu0 %1008, %v1006
    %v1010 = vpop.permute.xlu0 %1009
    %vm1012 = vcmask 261120
    %v1014 = vsel %vm1012, %v1005, 0
    %1016 = vmatprep.subr.mxu0 0.0
    %1017 = vmatpush1.msra.mxu0 %v1001
    %1018 = vmatprep.subr.mxu0 0.0
    %1019 = vmatpush1.msra.mxu0 %v1002
    %1020 = vmatprep.subr.mxu0 0.0
    %1021 = vmatpush1.msra.mxu0 %v1003
    %1022 = vmatprep.subr.mxu0 0.0
    %1023 = vmatpush1.msra.mxu0 %v1004
    %1024 = vmatprep.subr.mxu0 0.0
    %1025 = vmatpush1.msra.mxu0 0.0
    %1026 = vmatprep.subr.mxu0 0.0
    %1027 = vmatpush1.msra.mxu0 0.0
    %1028 = vmatprep.subr.mxu0 0.0
    %1029 = vmatpush1.msra.mxu0 0.0
    %1030 = vmatprep.subr.mxu0 0.0
    %1031 = vmatpush1.msra.mxu0 0.0
    %1032 = vmatprep.subr.mxu0 0.0
    %1033 = vmatpush1.msra.mxu0 0.0
    %1034 = vmatprep.subr.mxu0 0.0
    %1035 = vmatpush1.msra.mxu0 0.0
    %1036 = vmatprep.subr.mxu0 0.0
    %1037 = vmatpush1.msra.mxu0 0.0
    %1038 = vmatprep.subr.mxu0 0.0
    %1039 = vmatpush1.msra.mxu0 0.0
    %1040 = vmatprep.subr.mxu0 0.0
    %1041 = vmatpush1.msra.mxu0 0.0
    %1042 = vmatprep.subr.mxu0 0.0
    %1043 = vmatpush1.msra.mxu0 0.0
    %1044 = vmatprep.subr.mxu0 0.0
    %1045 = vmatpush1.msra.mxu0 0.0
    %1046 = vmatprep.subr.mxu0 0.0
    %1047 = vmatpush1.msra.mxu0 0.0
    %1048 = vmatprep.subr.mxu0 0.0
    %1049 = vmatpush1.msra.mxu0 0.0
    %1050 = vmatprep.subr.mxu0 0.0
    %1051 = vmatpush1.msra.mxu0 0.0
    %1052 = vmatprep.subr.mxu0 0.0
    %1053 = vmatpush1.msra.mxu0 0.0
    %1054 = vmatprep.subr.mxu0 0.0
    %1055 = vmatpush1.msra.mxu0 0.0
    %1056 = vmatprep.subr.mxu0 0.0
    %1057 = vmatpush1.msra.mxu0 0.0
    %1058 = vmatprep.subr.mxu0 0.0
    %1059 = vmatpush1.msra.mxu0 0.0
    %1060 = vmatprep.subr.mxu0 0.0
    %1061 = vmatpush1.msra.mxu0 0.0
    %1062 = vmatprep.subr.mxu0 0.0
    %1063 = vmatpush1.msra.mxu0 0.0
    %1064 = vmatprep.subr.mxu0 0.0
    %1065 = vmatpush1.msra.mxu0 0.0
    %1066 = vmatprep.subr.mxu0 0.0
    %1067 = vmatpush1.msra.mxu0 0.0
    %1068 = vmatprep.subr.mxu0 0.0
    %1069 = vmatpush1.msra.mxu0 0.0
    %1070 = vmatprep.subr.mxu0 0.0
    %1071 = vmatpush1.msra.mxu0 0.0
    %1072 = vmatprep.subr.mxu0 0.0
    %1073 = vmatpush1.msra.mxu0 0.0
    %1074 = vmatprep.subr.mxu0 0.0
    %1075 = vmatpush1.msra.mxu0 0.0
    %1076 = vmatprep.subr.mxu0 0.0
    %1077 = vmatpush1.msra.mxu0 0.0
    %1078 = vmatprep.subr.mxu0 0.0
    %1079 = vmatpush1.msra.mxu0 0.0
    %1080 = vmatprep.mubr.f32.mxu0 0.0
    %1081 = vmatmul.mubr.f32.gmra.mrb[0].mxu0 %v1014
    %v1082 = vpop.f32.mrb[0].mxu0
    %v1083 = vadd.f32 %v1010, %v1082
    %v1084 = vpop.f32.mrb[0].mxu0
    %1085 = vdwg.mxu0
    %v1086 = vtanh.pop %v1083
    %1087 = vst [vmem:[%s2] sm:$0xff] %v799
    %1088 = vst [vmem:[%s2 + $0x8] sm:$0xff] %v800
    %1089 = vst [vmem:[%s2 + $0x10] sm:$0x1] %v1086
    // Predicated region
    $region14: #{residual_network_forward.1} parent=1 // pred_check
      _
    $region15: #{residual_network_forward.1} parent=1 // pred_check_branch
      %1091 = sbr.rel (0) target = $region17
    $region16: #{residual_network_forward.1} parent=1 // pred_region
      _
    $region17: #{residual_network_forward.1} parent=1 // pred_fallthru
      _
    // Predicated region
    $region18: #{residual_network_forward.1} parent=1 // pred_check
      _
    $region19: #{residual_network_forward.1} parent=1 // pred_check_branch
      %1093 = sbr.rel (0) target = $region21
    $region20: #{residual_network_forward.1} parent=1 // pred_region
      _
    $region21: #{residual_network_forward.1} parent=1 // pred_fallthru
      _
    %1094 = vsyncpa [#allocation3], 1

</llo_original>
